<compile_context>
chip_gen: v6e
topology: v6e:2x2x1
jax: 0.10.0
libtpu: 0.0.40
codegen_flags: <defaults>
</compile_context>

<pallas_src>
import math

import jax
import jax.numpy as jnp
import numpy as np
from jax import lax
from jax.experimental import pallas as pl
from jax.experimental.pallas import tpu as pltpu

# ------------------------- static configuration -----------------------------
B = 2               # batch
C = 8               # total_channels (mel channels)
T = 16              # mel time frames
D = 32              # cross_attention_dim
G = 16              # film_global_dim
S_TEXT = 6          # text tokens produced by the text encoder
S = S_TEXT + 2      # + two blank tokens
H = 4               # num_heads
HD = D // H         # head dim
TEMP = 0.6          # attention_temperature
INV_TEMP = 1.0 / TEMP
FILM_SCALE = 0.05   # FiLM init_scale parameter
TIF = 0.3           # text_impact_factor parameter
BLEND = 1.0 / (1.0 + math.exp(-TIF))   # sigmoid(text_impact_factor)
LN_EPS = 1e-5
NEG = -1e30
DH = D // 2

# row indices inside the packed (32, 128) constants array
R_FILM_B = 0        # [bg(8) | bb(8)]
R_B_M2A = 1         # (32)
R_BQ = 2            # (32)
R_BKV = 3           # [bk(32) | bv(32)]
R_BO = 4            # (32)
R_LN1W = 5
R_LN1B = 6
R_B1 = 7            # (128)
R_B2 = 8            # (32)
R_LN2W = 9
R_LN2B = 10
R_ROPE = 16         # rows 16..31: lanes 0:16 = cos, lanes 16:32 = sin

# row offsets inside the packed (264, 32) weight array (all have input dim D)
O_WQ = 0            # wq * (1/temp)          (D rows)
O_WKV = D           # [wk * (1/temp); wv]    (2D rows)
O_WO = 3 * D        # wo                     (D rows)
O_W1 = 4 * D        # ffn w1                 (4D rows)
O_WA2M = 8 * D      # attn_to_mel weight     (C rows)
WD_ROWS = 8 * D + C


# ------------------------------ helpers --------------------------------------
def _ln(v, w, b):
    mu = jnp.mean(v, axis=-1, keepdims=True)
    var = jnp.mean((v - mu) ** 2, axis=-1, keepdims=True)
    return (v - mu) / jnp.sqrt(var + LN_EPS) * w + b


def _mm_t(a, w):
    # a @ w.T  (contract last dim of both)
    return lax.dot_general(a, w, (((1,), (1,)), ((), ())),
                           preferred_element_type=jnp.float32)


def _rope_tables(t_len):
    dim_t = jnp.arange(DH, dtype=jnp.float32)
    inv_freq = 1.0 / (10000.0 ** (dim_t / DH))
    pos = jnp.arange(t_len, dtype=jnp.float32)[:, None]
    angles = pos * inv_freq[None, :]
    return jnp.cos(angles), jnp.sin(angles)      # each (T, D/2)


# ------------------------------ fused kernel ----------------------------------
def text_conditioner_kernel(xt_ref, xct_ref, g_ref, seq_ref, kbias_ref,
                            wg_ref, wm2a_ref, wd_ref, w2_ref, const_ref,
                            ba2m_ref, o_ref):
    """Whole TextConditioner forward for one batch element (eval mode)."""
    x_tc = xt_ref[0]          # (T, C) time-major mel
    x_ct = xct_ref[0]         # (C, T) original channel-major mel
    g = g_ref[0]              # (1, G) global text embedding
    cseq = seq_ref[0]         # (S, D) conditioning sequence
    kbias = kbias_ref[0]      # (1, S) additive key-padding bias

    # ---- FiLM (global text embedding) ----
    gb = _mm_t(g, wg_ref[...]) + const_ref[R_FILM_B:R_FILM_B + 1, 0:2 * C]   # (1, 2C)
    gb = 300.0 * jnp.tanh(gb * (1.0 / 300.0))
    gamma = gb[:, :C]
    beta = gb[:, C:2 * C]
    filmed = FILM_SCALE * (gamma * x_tc + beta)                              # (T, C)

    # ---- mel_to_attn (single matmul) + RoPE ----
    y0 = _mm_t(filmed, wm2a_ref[...]) + const_ref[R_B_M2A:R_B_M2A + 1, 0:D]  # (T, D)
    cos = const_ref[R_ROPE:R_ROPE + T, 0:DH]
    sin = const_ref[R_ROPE:R_ROPE + T, DH:D]
    lo = y0[:, :DH]
    hi = y0[:, DH:]
    xa = jnp.concatenate([lo * cos - hi * sin, lo * sin + hi * cos], axis=-1)  # (T, D)

    # ---- cross-attention (wq, wk prescaled by 1/temperature in the wrapper) ----
    Q = _mm_t(xa, wd_ref[O_WQ:O_WQ + D, :]) + const_ref[R_BQ:R_BQ + 1, 0:D]        # (T, D)
    KV = _mm_t(cseq, wd_ref[O_WKV:O_WKV + 2 * D, :]) + const_ref[R_BKV:R_BKV + 1, 0:2 * D]
    K = KV[:, :D]                                                                   # (S, D)
    V = KV[:, D:]                                                                   # (S, D)
    inv_sqrt = 1.0 / math.sqrt(HD)
    heads = []
    for h in range(H):                                   # static unroll, H*HD is tiny
        s0 = h * HD
        sc = _mm_t(Q[:, s0:s0 + HD], K[:, s0:s0 + HD]) * inv_sqrt + kbias           # (T, S)
        m = jnp.max(sc, axis=-1, keepdims=True)
        p = jnp.exp(sc - m)
        attn = p / jnp.sum(p, axis=-1, keepdims=True)
        heads.append(lax.dot_general(attn, V[:, s0:s0 + HD], (((1,), (0,)), ((), ())),
                                     preferred_element_type=jnp.float32))           # (T, HD)
    attn_cat = jnp.concatenate(heads, axis=-1)                                       # (T, D)
    attn_out = _mm_t(attn_cat, wd_ref[O_WO:O_WO + D, :]) + const_ref[R_BO:R_BO + 1, 0:D]

    x1 = _ln(xa + attn_out,
             const_ref[R_LN1W:R_LN1W + 1, 0:D], const_ref[R_LN1B:R_LN1B + 1, 0:D])
    hmid = jnp.maximum(
        _mm_t(x1, wd_ref[O_W1:O_W1 + 4 * D, :]) + const_ref[R_B1:R_B1 + 1, 0:4 * D], 0.0)
    f = _mm_t(hmid, w2_ref[...]) + const_ref[R_B2:R_B2 + 1, 0:D]
    x2 = _ln(x1 + f,
             const_ref[R_LN2W:R_LN2W + 1, 0:D], const_ref[R_LN2B:R_LN2B + 1, 0:D])   # (T, D)

    # ---- attn_to_mel + RMS normalization + sigmoid blend + norm restore ----
    # (C, T) computed directly: W_a2m @ x2^T  (avoids any in-kernel transpose)
    x_cond = _mm_t(wd_ref[O_WA2M:O_WA2M + C, :], x2) + ba2m_ref[...]                 # (C, T)
    per_t = jnp.sum(x_cond * x_cond, axis=0, keepdims=True)                          # (1, T)
    rms = jnp.sqrt(jnp.mean(per_t, axis=-1, keepdims=True))                          # (1, 1)
    x_cond = x_cond / jnp.maximum(rms, 1e-5)
    x_new = (1.0 - BLEND) * x_ct + BLEND * x_cond
    new_n = jnp.sqrt(jnp.sum(x_new * x_new, axis=0, keepdims=True))                  # (1, T)
    old_n = jnp.sqrt(jnp.sum(x_ct * x_ct, axis=0, keepdims=True))                    # (1, T)
    o_ref[0] = x_new * (old_n / jnp.maximum(new_n, 1e-8))


# ------------------------------ glue / wrapper --------------------------------
def pack_params(p):
    """Pack the many small parameters into a few lane-dense arrays (done once)."""
    def row(*vecs):
        v = jnp.concatenate([jnp.reshape(x, (-1,)).astype(jnp.float32) for x in vecs])
        return jnp.pad(v, (0, 128 - v.shape[0]))

    bias_rows = [
        row(p["bg"], p["bb"]),            # 0
        row(p["b_m2a"]),                  # 1
        row(p["bq"]),                     # 2
        row(p["bk"], p["bv"]),            # 3
        row(p["bo"]),                     # 4
        row(p["ln1w"]),                   # 5
        row(p["ln1b"]),                   # 6
        row(p["b1"]),                     # 7
        row(p["b2"]),                     # 8
        row(p["ln2w"]),                   # 9
        row(p["ln2b"]),                   # 10
    ]
    bias_rows += [jnp.zeros((128,), jnp.float32)] * (16 - len(bias_rows))
    cos, sin = _rope_tables(T)
    rope = jnp.pad(jnp.concatenate([cos, sin], axis=1), ((0, 0), (0, 128 - D)))
    const = jnp.concatenate([jnp.stack(bias_rows), rope], axis=0)      # (32, 128)

    wd = jnp.concatenate(
        [p["wq"] * INV_TEMP, p["wk"] * INV_TEMP, p["wv"], p["wo"],
         p["w1"], p["w_a2m"]], axis=0)                                  # (264, D)

    return {
        "wg": jnp.concatenate([p["wg"], p["wb"]], axis=0),              # (2C, G)
        "w_m2a": p["w_m2a"],                                            # (D, C)
        "wd": wd,
        "w2": p["w2"],                                                  # (D, 4D)
        "const": const,                                                 # (32, 128)
        "b_a2m": p["b_a2m"],                                            # (C, 1)
        "blank_emb": p["blank_emb"],
        "text_pos_embed": p["text_pos_embed"],
    }


@jax.jit
def _forward_jit(x_mel, global_emb, seq_emb, text_key_mask, packed):
    bsz = x_mel.shape[0]
    x_t = jnp.swapaxes(x_mel, 1, 2)                      # (B, T, C)
    g3 = global_emb[:, None, :]                          # (B, 1, G)

    # conditioning sequence prep (glue): blank tokens + masked positional embed
    blank = jnp.broadcast_to(packed["blank_emb"], (bsz, 1, D))
    seq = jnp.concatenate([blank, seq_emb, blank], axis=1)              # (B, S, D)
    mask = jnp.concatenate(
        [jnp.zeros((bsz, 1), bool), text_key_mask, jnp.zeros((bsz, 1), bool)],
        axis=1)                                                         # (B, S)
    pos = packed["text_pos_embed"][:, :S, :]
    seq = seq + pos * (~mask)[..., None].astype(jnp.float32)
    key_bias = jnp.where(mask, NEG, 0.0).astype(jnp.float32)[:, None, :]  # (B, 1, S)

    full2 = lambda shape: pl.BlockSpec(shape, lambda b: (0, 0))

    x_out = pl.pallas_call(
        text_conditioner_kernel,
        out_shape=jax.ShapeDtypeStruct((bsz, C, T), jnp.float32),
        grid=(bsz,),
        in_specs=[
            pl.BlockSpec((1, T, C), lambda b: (b, 0, 0)),    # x time-major
            pl.BlockSpec((1, C, T), lambda b: (b, 0, 0)),    # x channel-major (orig)
            pl.BlockSpec((1, 1, G), lambda b: (b, 0, 0)),    # global embedding
            pl.BlockSpec((1, S, D), lambda b: (b, 0, 0)),    # conditioning sequence
            pl.BlockSpec((1, 1, S), lambda b: (b, 0, 0)),    # key-padding bias
            full2((2 * C, G)),                               # packed FiLM weights
            full2((D, C)),                                   # mel_to_attn weight
            full2((WD_ROWS, D)),                             # packed D-input weights
            full2((D, 4 * D)),                               # ffn w2
            full2((32, 128)),                                # packed biases + RoPE
            full2((C, 1)),                                   # attn_to_mel bias
        ],
        out_specs=pl.BlockSpec((1, C, T), lambda b: (b, 0, 0)),
        compiler_params=pltpu.CompilerParams(
            dimension_semantics=("parallel",)),              # v7x: 2 TCs shard batch
    )(x_t, x_mel, g3, seq, key_bias,
      packed["wg"], packed["w_m2a"], packed["wd"], packed["w2"],
      packed["const"], packed["b_a2m"])
    return x_out


def text_conditioner_forward(x_mel, global_emb, seq_emb, text_key_mask, packed):
    """x_mel: (B, C, T); global_emb: (B, G); seq_emb: (B, S_TEXT, D);
    text_key_mask: (B, S_TEXT) bool (True = padding).  q_pad_mask assumed None."""
    x_out = _forward_jit(x_mel, global_emb, seq_emb, text_key_mask, packed)
    # TODO(synk): the PyTorch module's debug metrics (attention/film stats via
    # .item(), prints, top_attended_positions) force blocking device->host syncs
    # and are omitted from the hot path; only the static blend factor is reported.
    metrics = {"blend_factor": BLEND}
    return x_out, metrics


# ------------------------- plain-JAX reference (check) ------------------------
def reference_forward(x_mel, global_emb, seq_emb, text_key_mask, p):
    bsz = x_mel.shape[0]
    cos_t, sin_t = _rope_tables(T)
    x_t = jnp.swapaxes(x_mel, 1, 2)
    gamma = global_emb @ p["wg"].T + p["bg"]
    beta = global_emb @ p["wb"].T + p["bb"]
    gamma = 300.0 * jnp.tanh(gamma / 300.0)
    beta = 300.0 * jnp.tanh(beta / 300.0)
    x_f = FILM_SCALE * (gamma[:, None, :] * x_t + beta[:, None, :])
    xa = x_f @ p["w_m2a"].T + p["b_m2a"]
    h0, h1 = xa[..., :DH], xa[..., DH:]
    xa = jnp.concatenate([h0 * cos_t - h1 * sin_t, h0 * sin_t + h1 * cos_t], -1)
    blank = jnp.broadcast_to(p["blank_emb"], (bsz, 1, D))
    seq = jnp.concatenate([blank, seq_emb, blank], axis=1)
    mask = jnp.concatenate(
        [jnp.zeros((bsz, 1), bool), text_key_mask, jnp.zeros((bsz, 1), bool)], 1)
    seq = seq + p["text_pos_embed"][:, :S, :] * (~mask)[..., None].astype(jnp.float32)
    Q = (xa * INV_TEMP) @ p["wq"].T + p["bq"]
    K = (seq * INV_TEMP) @ p["wk"].T + p["bk"]
    V = seq @ p["wv"].T + p["bv"]
    Qh = Q.reshape(bsz, T, H, HD)
    Kh = K.reshape(bsz, S, H, HD)
    Vh = V.reshape(bsz, S, H, HD)
    scores = jnp.einsum("bthd,bshd->bhts", Qh, Kh) / math.sqrt(HD)
    scores = scores + jnp.where(mask, NEG, 0.0)[:, None, None, :]
    attn = jax.nn.softmax(scores, axis=-1)
    out = jnp.einsum("bhts,bshd->bthd", attn, Vh).reshape(bsz, T, D)
    attn_out = out @ p["wo"].T + p["bo"]
    x1 = _ln(xa + attn_out, p["ln1w"], p["ln1b"])
    f = jnp.maximum(x1 @ p["w1"].T + p["b1"], 0.0) @ p["w2"].T + p["b2"]
    x2 = _ln(x1 + f, p["ln2w"], p["ln2b"])
    x_t2 = x2 @ p["w_a2m"].T + p["b_a2m"][:, 0]
    x_ct = jnp.swapaxes(x_t2, 1, 2)
    norm = jnp.sqrt(jnp.mean(jnp.sum(x_ct ** 2, axis=1, keepdims=True),
                             axis=-1, keepdims=True))
    x_cond = x_ct / jnp.maximum(norm, 1e-5)
    x_new = (1.0 - BLEND) * x_mel + BLEND * x_cond
    new_norm = jnp.sqrt(jnp.sum(x_new ** 2, axis=1, keepdims=True))
    old_norm = jnp.sqrt(jnp.sum(x_mel ** 2, axis=1, keepdims=True))
    return x_new * (old_norm / jnp.maximum(new_norm, 1e-8))


# -------------------------- deterministic params ------------------------------
def init_params(key):
    ks = list(jax.random.split(key, 32))
    it = iter(ks)
    n = lambda shape, s: jax.random.normal(next(it), shape, jnp.float32) * s
    p = {}
    p["wg"], p["bg"] = n((C, G), 0.05), n((1, C), 0.01)
    p["wb"], p["bb"] = n((C, G), 0.05), n((1, C), 0.01)
    xav = math.sqrt(2.0 / (C + D))
    p["w_m2a"] = n((D, C), xav)
    p["b_m2a"] = jnp.zeros((1, D), jnp.float32)
    p["blank_emb"] = n((1, 1, D), 0.02)
    p["text_pos_embed"] = n((1, 256, D), 0.02)
    for name in ("wq", "wk", "wv", "wo"):
        p[name] = n((D, D), 1.0 / math.sqrt(D))
    for name in ("bq", "bk", "bv", "bo"):
        p[name] = n((1, D), 0.01)
    p["ln1w"], p["ln1b"] = jnp.ones((1, D), jnp.float32), jnp.zeros((1, D), jnp.float32)
    p["ln2w"], p["ln2b"] = jnp.ones((1, D), jnp.float32), jnp.zeros((1, D), jnp.float32)
    p["w1"], p["b1"] = n((4 * D, D), 1.0 / math.sqrt(D)), n((1, 4 * D), 0.01)
    p["w2"], p["b2"] = n((D, 4 * D), 1.0 / math.sqrt(4 * D)), n((1, D), 0.01)
    p["w_a2m"] = n((C, D), math.sqrt(2.0 / (C + D)))
    p["b_a2m"] = jnp.zeros((C, 1), jnp.float32)
    return p


# ----------------------------------- main -------------------------------------
if __name__ == "__main__":
    key = jax.random.PRNGKey(0)
    k_p, k_x, k_g, k_s = jax.random.split(key, 4)
    params = init_params(k_p)
    packed = pack_params(params)

    x_mel = jax.random.normal(k_x, (B, C, T), jnp.float32)
    # TODO(synk): the text_encoder is instantiated from a Hydra config in the
    # original module; its outputs (global_emb, seq_emb, text_key_mask) are
    # taken as deterministic synthetic inputs here instead.
    global_emb = jax.random.normal(k_g, (B, G), jnp.float32)
    seq_emb = jax.random.normal(k_s, (B, S_TEXT, D), jnp.float32) * 0.1
    text_key_mask = jnp.array(
        [[False] * S_TEXT,
         [False, False, False, False, True, True]])

    x_out, metrics = text_conditioner_forward(
        x_mel, global_emb, seq_emb, text_key_mask, packed)
    x_out = jax.block_until_ready(x_out)

    ref = reference_forward(x_mel, global_emb, seq_emb, text_key_mask, params)
    np.testing.assert_allclose(np.asarray(x_out), np.asarray(ref),
                               atol=2e-3, rtol=2e-3)
    print("KERNEL_OK")
</pallas_src>

<mosaic_0001>
module attributes {stable_mosaic.version = 11 : i64} {
  func.func @text_conditioner_kernel(%arg0: i32, %arg1: memref<1x16x8xf32, #tpu.memory_space<vmem>>, %arg2: memref<1x8x16xf32, #tpu.memory_space<vmem>>, %arg3: memref<1x1x16xf32, #tpu.memory_space<vmem>>, %arg4: memref<1x8x32xf32, #tpu.memory_space<vmem>>, %arg5: memref<1x1x8xf32, #tpu.memory_space<vmem>>, %arg6: memref<16x16xf32, #tpu.memory_space<vmem>>, %arg7: memref<32x8xf32, #tpu.memory_space<vmem>>, %arg8: memref<264x32xf32, #tpu.memory_space<vmem>>, %arg9: memref<32x128xf32, #tpu.memory_space<vmem>>, %arg10: memref<32x128xf32, #tpu.memory_space<vmem>>, %arg11: memref<8x1xf32, #tpu.memory_space<vmem>>, %arg12: memref<1x8x16xf32, #tpu.memory_space<vmem>>) attributes {dimension_semantics = [#tpu.dimension_semantics<parallel>], iteration_bounds = array<i64: 2>, scalar_prefetch = 0 : i64, scratch_operands = 0 : i64, tpu.core_type = #tpu.core_type<tc>, window_params = [{transform_indices = @transform_0, window_bounds = array<i64: 1, 16, 8>}, {transform_indices = @transform_1, window_bounds = array<i64: 1, 8, 16>}, {transform_indices = @transform_2, window_bounds = array<i64: 1, 1, 16>}, {transform_indices = @transform_3, window_bounds = array<i64: 1, 8, 32>}, {transform_indices = @transform_4, window_bounds = array<i64: 1, 1, 8>}, {pipeline_mode = #tpu.pipeline_mode<synchronous>, transform_indices = @transform_5, window_bounds = array<i64: 16, 16>}, {pipeline_mode = #tpu.pipeline_mode<synchronous>, transform_indices = @transform_6, window_bounds = array<i64: 32, 8>}, {pipeline_mode = #tpu.pipeline_mode<synchronous>, transform_indices = @transform_7, window_bounds = array<i64: 264, 32>}, {pipeline_mode = #tpu.pipeline_mode<synchronous>, transform_indices = @transform_8, window_bounds = array<i64: 32, 128>}, {pipeline_mode = #tpu.pipeline_mode<synchronous>, transform_indices = @transform_9, window_bounds = array<i64: 32, 128>}, {pipeline_mode = #tpu.pipeline_mode<synchronous>, transform_indices = @transform_10, window_bounds = array<i64: 8, 1>}, {transform_indices = @transform_11, window_bounds = array<i64: 1, 8, 16>}]} {
    %c0 = arith.constant 0 : index
    %c0_0 = arith.constant 0 : index
    %c0_1 = arith.constant 0 : index
    %0 = vector.load %arg1[%c0, %c0_0, %c0_1] : memref<1x16x8xf32, #tpu.memory_space<vmem>>, vector<1x16x8xf32>
    %1 = vector.shape_cast %0 : vector<1x16x8xf32> to vector<16x8xf32>
    %c0_2 = arith.constant 0 : index
    %c0_3 = arith.constant 0 : index
    %c0_4 = arith.constant 0 : index
    %2 = vector.load %arg2[%c0_2, %c0_3, %c0_4] : memref<1x8x16xf32, #tpu.memory_space<vmem>>, vector<1x8x16xf32>
    %3 = vector.shape_cast %2 : vector<1x8x16xf32> to vector<8x16xf32>
    %c0_5 = arith.constant 0 : index
    %c0_6 = arith.constant 0 : index
    %c0_7 = arith.constant 0 : index
    %4 = vector.load %arg3[%c0_5, %c0_6, %c0_7] : memref<1x1x16xf32, #tpu.memory_space<vmem>>, vector<1x1x16xf32>
    %5 = vector.shape_cast %4 : vector<1x1x16xf32> to vector<1x16xf32>
    %c0_8 = arith.constant 0 : index
    %c0_9 = arith.constant 0 : index
    %c0_10 = arith.constant 0 : index
    %6 = vector.load %arg4[%c0_8, %c0_9, %c0_10] : memref<1x8x32xf32, #tpu.memory_space<vmem>>, vector<1x8x32xf32>
    %7 = vector.shape_cast %6 : vector<1x8x32xf32> to vector<8x32xf32>
    %c0_11 = arith.constant 0 : index
    %c0_12 = arith.constant 0 : index
    %c0_13 = arith.constant 0 : index
    %8 = vector.load %arg5[%c0_11, %c0_12, %c0_13] : memref<1x1x8xf32, #tpu.memory_space<vmem>>, vector<1x1x8xf32>
    %9 = vector.shape_cast %8 : vector<1x1x8xf32> to vector<1x8xf32>
    %c0_14 = arith.constant 0 : index
    %c0_15 = arith.constant 0 : index
    %10 = vector.load %arg6[%c0_14, %c0_15] : memref<16x16xf32, #tpu.memory_space<vmem>>, vector<16x16xf32>
    %cst = arith.constant dense<0.000000e+00> : vector<1x16xf32>
    %11 = tpu.matmul %5, %10, %cst {dimension_numbers = #tpu.dot_dimension_numbers<[1], [1], [0], [0], [0, 0, 1, 0], [], []>} : vector<1x16xf32>, vector<16x16xf32>, vector<1x16xf32> -> vector<1x16xf32>
    %c0_16 = arith.constant 0 : index
    %c0_17 = arith.constant 0 : index
    %12 = vector.load %arg10[%c0_16, %c0_17] : memref<32x128xf32, #tpu.memory_space<vmem>>, vector<1x16xf32>
    %13 = arith.addf %11, %12 : vector<1x16xf32>
    %cst_18 = arith.constant 0.00333333341 : f32
    %14 = vector.broadcast %cst_18 : f32 to vector<1x16xf32>
    %15 = arith.mulf %13, %14 : vector<1x16xf32>
    %16 = math.tanh %15 : vector<1x16xf32>
    %cst_19 = arith.constant 3.000000e+02 : f32
    %17 = vector.broadcast %cst_19 : f32 to vector<1x16xf32>
    %18 = arith.mulf %17, %16 : vector<1x16xf32>
    %19 = vector.extract_strided_slice %18 {offsets = [0, 0], sizes = [1, 8], strides = [1, 1]} : vector<1x16xf32> to vector<1x8xf32>
    %20 = vector.extract_strided_slice %18 {offsets = [0, 8], sizes = [1, 8], strides = [1, 1]} : vector<1x16xf32> to vector<1x8xf32>
    %21 = vector.broadcast %19 : vector<1x8xf32> to vector<16x8xf32>
    %22 = arith.mulf %21, %1 : vector<16x8xf32>
    %23 = vector.broadcast %20 : vector<1x8xf32> to vector<16x8xf32>
    %24 = arith.addf %22, %23 : vector<16x8xf32>
    %cst_20 = arith.constant 5.000000e-02 : f32
    %25 = vector.broadcast %cst_20 : f32 to vector<16x8xf32>
    %26 = arith.mulf %25, %24 : vector<16x8xf32>
    %c0_21 = arith.constant 0 : index
    %c0_22 = arith.constant 0 : index
    %27 = vector.load %arg7[%c0_21, %c0_22] : memref<32x8xf32, #tpu.memory_space<vmem>>, vector<32x8xf32>
    %cst_23 = arith.constant dense<0.000000e+00> : vector<16x32xf32>
    %28 = tpu.matmul %26, %27, %cst_23 {dimension_numbers = #tpu.dot_dimension_numbers<[1], [1], [0], [0], [0, 0, 1, 0], [], []>} : vector<16x8xf32>, vector<32x8xf32>, vector<16x32xf32> -> vector<16x32xf32>
    %c1 = arith.constant 1 : index
    %c0_24 = arith.constant 0 : index
    %29 = vector.load %arg10[%c1, %c0_24] : memref<32x128xf32, #tpu.memory_space<vmem>>, vector<1x32xf32>
    %30 = vector.broadcast %29 : vector<1x32xf32> to vector<16x32xf32>
    %31 = arith.addf %28, %30 : vector<16x32xf32>
    %c16 = arith.constant 16 : index
    %c0_25 = arith.constant 0 : index
    %32 = vector.load %arg10[%c16, %c0_25] : memref<32x128xf32, #tpu.memory_space<vmem>>, vector<16x16xf32>
    %c16_26 = arith.constant 16 : index
    %c16_27 = arith.constant 16 : index
    %33 = vector.load %arg10[%c16_26, %c16_27] : memref<32x128xf32, #tpu.memory_space<vmem>>, vector<16x16xf32>
    %34 = vector.extract_strided_slice %31 {offsets = [0, 0], sizes = [16, 16], strides = [1, 1]} : vector<16x32xf32> to vector<16x16xf32>
    %35 = vector.extract_strided_slice %31 {offsets = [0, 16], sizes = [16, 16], strides = [1, 1]} : vector<16x32xf32> to vector<16x16xf32>
    %36 = arith.mulf %34, %32 : vector<16x16xf32>
    %37 = arith.mulf %35, %33 : vector<16x16xf32>
    %38 = arith.subf %36, %37 : vector<16x16xf32>
    %39 = arith.mulf %34, %33 : vector<16x16xf32>
    %40 = arith.mulf %35, %32 : vector<16x16xf32>
    %41 = arith.addf %39, %40 : vector<16x16xf32>
    %42 = tpu.concatenate %38, %41 in 1 : vector<16x16xf32>, vector<16x16xf32> -> vector<16x32xf32>
    %c0_28 = arith.constant 0 : index
    %c0_29 = arith.constant 0 : index
    %43 = vector.load %arg8[%c0_28, %c0_29] : memref<264x32xf32, #tpu.memory_space<vmem>>, vector<32x32xf32>
    %cst_30 = arith.constant dense<0.000000e+00> : vector<16x32xf32>
    %44 = tpu.matmul %42, %43, %cst_30 {dimension_numbers = #tpu.dot_dimension_numbers<[1], [1], [0], [0], [0, 0, 1, 0], [], []>} : vector<16x32xf32>, vector<32x32xf32>, vector<16x32xf32> -> vector<16x32xf32>
    %c2 = arith.constant 2 : index
    %c0_31 = arith.constant 0 : index
    %45 = vector.load %arg10[%c2, %c0_31] : memref<32x128xf32, #tpu.memory_space<vmem>>, vector<1x32xf32>
    %46 = vector.broadcast %45 : vector<1x32xf32> to vector<16x32xf32>
    %47 = arith.addf %44, %46 : vector<16x32xf32>
    %c32 = arith.constant 32 : index
    %c0_32 = arith.constant 0 : index
    %48 = vector.load %arg8[%c32, %c0_32] : memref<264x32xf32, #tpu.memory_space<vmem>>, vector<64x32xf32>
    %cst_33 = arith.constant dense<0.000000e+00> : vector<8x64xf32>
    %49 = tpu.matmul %7, %48, %cst_33 {dimension_numbers = #tpu.dot_dimension_numbers<[1], [1], [0], [0], [0, 0, 1, 0], [], []>} : vector<8x32xf32>, vector<64x32xf32>, vector<8x64xf32> -> vector<8x64xf32>
    %c3 = arith.constant 3 : index
    %c0_34 = arith.constant 0 : index
    %50 = vector.load %arg10[%c3, %c0_34] : memref<32x128xf32, #tpu.memory_space<vmem>>, vector<1x64xf32>
    %51 = vector.broadcast %50 : vector<1x64xf32> to vector<8x64xf32>
    %52 = arith.addf %49, %51 : vector<8x64xf32>
    %53 = vector.extract_strided_slice %52 {offsets = [0, 0], sizes = [8, 32], strides = [1, 1]} : vector<8x64xf32> to vector<8x32xf32>
    %54 = vector.extract_strided_slice %52 {offsets = [0, 32], sizes = [8, 32], strides = [1, 1]} : vector<8x64xf32> to vector<8x32xf32>
    %55 = vector.extract_strided_slice %47 {offsets = [0, 0], sizes = [16, 8], strides = [1, 1]} : vector<16x32xf32> to vector<16x8xf32>
    %56 = vector.extract_strided_slice %53 {offsets = [0, 0], sizes = [8, 8], strides = [1, 1]} : vector<8x32xf32> to vector<8x8xf32>
    %cst_35 = arith.constant dense<0.000000e+00> : vector<16x8xf32>
    %57 = tpu.matmul %55, %56, %cst_35 {dimension_numbers = #tpu.dot_dimension_numbers<[1], [1], [0], [0], [0, 0, 1, 0], [], []>} : vector<16x8xf32>, vector<8x8xf32>, vector<16x8xf32> -> vector<16x8xf32>
    %cst_36 = arith.constant 0.353553385 : f32
    %58 = vector.broadcast %cst_36 : f32 to vector<16x8xf32>
    %59 = arith.mulf %57, %58 : vector<16x8xf32>
    %60 = vector.broadcast %9 : vector<1x8xf32> to vector<16x8xf32>
    %61 = arith.addf %59, %60 : vector<16x8xf32>
    %cst_37 = arith.constant dense<0xFF800000> : vector<16xf32>
    %62 = vector.multi_reduction <maximumf>, %61, %cst_37 [1] : vector<16x8xf32> to vector<16xf32>
    %63 = vector.shape_cast %62 : vector<16xf32> to vector<16x1xf32>
    %64 = vector.broadcast %63 : vector<16x1xf32> to vector<16x8xf32>
    %65 = arith.subf %61, %64 : vector<16x8xf32>
    %66 = math.exp %65 : vector<16x8xf32>
    %cst_38 = arith.constant dense<0.000000e+00> : vector<16xf32>
    %67 = vector.multi_reduction <add>, %66, %cst_38 [1] : vector<16x8xf32> to vector<16xf32>
    %68 = vector.shape_cast %67 : vector<16xf32> to vector<16x1xf32>
    %69 = vector.broadcast %68 : vector<16x1xf32> to vector<16x8xf32>
    %70 = arith.divf %66, %69 : vector<16x8xf32>
    %71 = vector.extract_strided_slice %54 {offsets = [0, 0], sizes = [8, 8], strides = [1, 1]} : vector<8x32xf32> to vector<8x8xf32>
    %cst_39 = arith.constant dense<0.000000e+00> : vector<16x8xf32>
    %72 = tpu.matmul %70, %71, %cst_39 {dimension_numbers = #tpu.dot_dimension_numbers<[1], [0], [0], [1], [0, 0, 1, 1], [], []>} : vector<16x8xf32>, vector<8x8xf32>, vector<16x8xf32> -> vector<16x8xf32>
    %73 = vector.extract_strided_slice %47 {offsets = [0, 8], sizes = [16, 8], strides = [1, 1]} : vector<16x32xf32> to vector<16x8xf32>
    %74 = vector.extract_strided_slice %53 {offsets = [0, 8], sizes = [8, 8], strides = [1, 1]} : vector<8x32xf32> to vector<8x8xf32>
    %cst_40 = arith.constant dense<0.000000e+00> : vector<16x8xf32>
    %75 = tpu.matmul %73, %74, %cst_40 {dimension_numbers = #tpu.dot_dimension_numbers<[1], [1], [0], [0], [0, 0, 1, 0], [], []>} : vector<16x8xf32>, vector<8x8xf32>, vector<16x8xf32> -> vector<16x8xf32>
    %cst_41 = arith.constant 0.353553385 : f32
    %76 = vector.broadcast %cst_41 : f32 to vector<16x8xf32>
    %77 = arith.mulf %75, %76 : vector<16x8xf32>
    %78 = vector.broadcast %9 : vector<1x8xf32> to vector<16x8xf32>
    %79 = arith.addf %77, %78 : vector<16x8xf32>
    %cst_42 = arith.constant dense<0xFF800000> : vector<16xf32>
    %80 = vector.multi_reduction <maximumf>, %79, %cst_42 [1] : vector<16x8xf32> to vector<16xf32>
    %81 = vector.shape_cast %80 : vector<16xf32> to vector<16x1xf32>
    %82 = vector.broadcast %81 : vector<16x1xf32> to vector<16x8xf32>
    %83 = arith.subf %79, %82 : vector<16x8xf32>
    %84 = math.exp %83 : vector<16x8xf32>
    %cst_43 = arith.constant dense<0.000000e+00> : vector<16xf32>
    %85 = vector.multi_reduction <add>, %84, %cst_43 [1] : vector<16x8xf32> to vector<16xf32>
    %86 = vector.shape_cast %85 : vector<16xf32> to vector<16x1xf32>
    %87 = vector.broadcast %86 : vector<16x1xf32> to vector<16x8xf32>
    %88 = arith.divf %84, %87 : vector<16x8xf32>
    %89 = vector.extract_strided_slice %54 {offsets = [0, 8], sizes = [8, 8], strides = [1, 1]} : vector<8x32xf32> to vector<8x8xf32>
    %cst_44 = arith.constant dense<0.000000e+00> : vector<16x8xf32>
    %90 = tpu.matmul %88, %89, %cst_44 {dimension_numbers = #tpu.dot_dimension_numbers<[1], [0], [0], [1], [0, 0, 1, 1], [], []>} : vector<16x8xf32>, vector<8x8xf32>, vector<16x8xf32> -> vector<16x8xf32>
    %91 = vector.extract_strided_slice %47 {offsets = [0, 16], sizes = [16, 8], strides = [1, 1]} : vector<16x32xf32> to vector<16x8xf32>
    %92 = vector.extract_strided_slice %53 {offsets = [0, 16], sizes = [8, 8], strides = [1, 1]} : vector<8x32xf32> to vector<8x8xf32>
    %cst_45 = arith.constant dense<0.000000e+00> : vector<16x8xf32>
    %93 = tpu.matmul %91, %92, %cst_45 {dimension_numbers = #tpu.dot_dimension_numbers<[1], [1], [0], [0], [0, 0, 1, 0], [], []>} : vector<16x8xf32>, vector<8x8xf32>, vector<16x8xf32> -> vector<16x8xf32>
    %cst_46 = arith.constant 0.353553385 : f32
    %94 = vector.broadcast %cst_46 : f32 to vector<16x8xf32>
    %95 = arith.mulf %93, %94 : vector<16x8xf32>
    %96 = vector.broadcast %9 : vector<1x8xf32> to vector<16x8xf32>
    %97 = arith.addf %95, %96 : vector<16x8xf32>
    %cst_47 = arith.constant dense<0xFF800000> : vector<16xf32>
    %98 = vector.multi_reduction <maximumf>, %97, %cst_47 [1] : vector<16x8xf32> to vector<16xf32>
    %99 = vector.shape_cast %98 : vector<16xf32> to vector<16x1xf32>
    %100 = vector.broadcast %99 : vector<16x1xf32> to vector<16x8xf32>
    %101 = arith.subf %97, %100 : vector<16x8xf32>
    %102 = math.exp %101 : vector<16x8xf32>
    %cst_48 = arith.constant dense<0.000000e+00> : vector<16xf32>
    %103 = vector.multi_reduction <add>, %102, %cst_48 [1] : vector<16x8xf32> to vector<16xf32>
    %104 = vector.shape_cast %103 : vector<16xf32> to vector<16x1xf32>
    %105 = vector.broadcast %104 : vector<16x1xf32> to vector<16x8xf32>
    %106 = arith.divf %102, %105 : vector<16x8xf32>
    %107 = vector.extract_strided_slice %54 {offsets = [0, 16], sizes = [8, 8], strides = [1, 1]} : vector<8x32xf32> to vector<8x8xf32>
    %cst_49 = arith.constant dense<0.000000e+00> : vector<16x8xf32>
    %108 = tpu.matmul %106, %107, %cst_49 {dimension_numbers = #tpu.dot_dimension_numbers<[1], [0], [0], [1], [0, 0, 1, 1], [], []>} : vector<16x8xf32>, vector<8x8xf32>, vector<16x8xf32> -> vector<16x8xf32>
    %109 = vector.extract_strided_slice %47 {offsets = [0, 24], sizes = [16, 8], strides = [1, 1]} : vector<16x32xf32> to vector<16x8xf32>
    %110 = vector.extract_strided_slice %53 {offsets = [0, 24], sizes = [8, 8], strides = [1, 1]} : vector<8x32xf32> to vector<8x8xf32>
    %cst_50 = arith.constant dense<0.000000e+00> : vector<16x8xf32>
    %111 = tpu.matmul %109, %110, %cst_50 {dimension_numbers = #tpu.dot_dimension_numbers<[1], [1], [0], [0], [0, 0, 1, 0], [], []>} : vector<16x8xf32>, vector<8x8xf32>, vector<16x8xf32> -> vector<16x8xf32>
    %cst_51 = arith.constant 0.353553385 : f32
    %112 = vector.broadcast %cst_51 : f32 to vector<16x8xf32>
    %113 = arith.mulf %111, %112 : vector<16x8xf32>
    %114 = vector.broadcast %9 : vector<1x8xf32> to vector<16x8xf32>
    %115 = arith.addf %113, %114 : vector<16x8xf32>
    %cst_52 = arith.constant dense<0xFF800000> : vector<16xf32>
    %116 = vector.multi_reduction <maximumf>, %115, %cst_52 [1] : vector<16x8xf32> to vector<16xf32>
    %117 = vector.shape_cast %116 : vector<16xf32> to vector<16x1xf32>
    %118 = vector.broadcast %117 : vector<16x1xf32> to vector<16x8xf32>
    %119 = arith.subf %115, %118 : vector<16x8xf32>
    %120 = math.exp %119 : vector<16x8xf32>
    %cst_53 = arith.constant dense<0.000000e+00> : vector<16xf32>
    %121 = vector.multi_reduction <add>, %120, %cst_53 [1] : vector<16x8xf32> to vector<16xf32>
    %122 = vector.shape_cast %121 : vector<16xf32> to vector<16x1xf32>
    %123 = vector.broadcast %122 : vector<16x1xf32> to vector<16x8xf32>
    %124 = arith.divf %120, %123 : vector<16x8xf32>
    %125 = vector.extract_strided_slice %54 {offsets = [0, 24], sizes = [8, 8], strides = [1, 1]} : vector<8x32xf32> to vector<8x8xf32>
    %cst_54 = arith.constant dense<0.000000e+00> : vector<16x8xf32>
    %126 = tpu.matmul %124, %125, %cst_54 {dimension_numbers = #tpu.dot_dimension_numbers<[1], [0], [0], [1], [0, 0, 1, 1], [], []>} : vector<16x8xf32>, vector<8x8xf32>, vector<16x8xf32> -> vector<16x8xf32>
    %127 = tpu.concatenate %72, %90, %108, %126 in 1 : vector<16x8xf32>, vector<16x8xf32>, vector<16x8xf32>, vector<16x8xf32> -> vector<16x32xf32>
    %c96 = arith.constant 96 : index
    %c0_55 = arith.constant 0 : index
    %128 = vector.load %arg8[%c96, %c0_55] : memref<264x32xf32, #tpu.memory_space<vmem>>, vector<32x32xf32>
    %cst_56 = arith.constant dense<0.000000e+00> : vector<16x32xf32>
    %129 = tpu.matmul %127, %128, %cst_56 {dimension_numbers = #tpu.dot_dimension_numbers<[1], [1], [0], [0], [0, 0, 1, 0], [], []>} : vector<16x32xf32>, vector<32x32xf32>, vector<16x32xf32> -> vector<16x32xf32>
    %c4 = arith.constant 4 : index
    %c0_57 = arith.constant 0 : index
    %130 = vector.load %arg10[%c4, %c0_57] : memref<32x128xf32, #tpu.memory_space<vmem>>, vector<1x32xf32>
    %131 = vector.broadcast %130 : vector<1x32xf32> to vector<16x32xf32>
    %132 = arith.addf %129, %131 : vector<16x32xf32>
    %133 = arith.addf %42, %132 : vector<16x32xf32>
    %c5 = arith.constant 5 : index
    %c0_58 = arith.constant 0 : index
    %134 = vector.load %arg10[%c5, %c0_58] : memref<32x128xf32, #tpu.memory_space<vmem>>, vector<1x32xf32>
    %c6 = arith.constant 6 : index
    %c0_59 = arith.constant 0 : index
    %135 = vector.load %arg10[%c6, %c0_59] : memref<32x128xf32, #tpu.memory_space<vmem>>, vector<1x32xf32>
    %cst_60 = arith.constant dense<0.000000e+00> : vector<16xf32>
    %136 = vector.multi_reduction <add>, %133, %cst_60 [1] : vector<16x32xf32> to vector<16xf32>
    %137 = vector.shape_cast %136 : vector<16xf32> to vector<16x1xf32>
    %cst_61 = arith.constant 3.200000e+01 : f32
    %138 = vector.broadcast %cst_61 : f32 to vector<16x1xf32>
    %139 = arith.divf %137, %138 : vector<16x1xf32>
    %140 = vector.broadcast %139 : vector<16x1xf32> to vector<16x32xf32>
    %141 = arith.subf %133, %140 : vector<16x32xf32>
    %142 = arith.mulf %141, %141 : vector<16x32xf32>
    %cst_62 = arith.constant dense<0.000000e+00> : vector<16xf32>
    %143 = vector.multi_reduction <add>, %142, %cst_62 [1] : vector<16x32xf32> to vector<16xf32>
    %144 = vector.shape_cast %143 : vector<16xf32> to vector<16x1xf32>
    %cst_63 = arith.constant 3.200000e+01 : f32
    %145 = vector.broadcast %cst_63 : f32 to vector<16x1xf32>
    %146 = arith.divf %144, %145 : vector<16x1xf32>
    %147 = vector.broadcast %139 : vector<16x1xf32> to vector<16x32xf32>
    %148 = arith.subf %133, %147 : vector<16x32xf32>
    %cst_64 = arith.constant 9.99999974E-6 : f32
    %149 = vector.broadcast %cst_64 : f32 to vector<16x1xf32>
    %150 = arith.addf %146, %149 : vector<16x1xf32>
    %151 = math.sqrt %150 : vector<16x1xf32>
    %152 = vector.broadcast %151 : vector<16x1xf32> to vector<16x32xf32>
    %153 = arith.divf %148, %152 : vector<16x32xf32>
    %154 = vector.broadcast %134 : vector<1x32xf32> to vector<16x32xf32>
    %155 = arith.mulf %153, %154 : vector<16x32xf32>
    %156 = vector.broadcast %135 : vector<1x32xf32> to vector<16x32xf32>
    %157 = arith.addf %155, %156 : vector<16x32xf32>
    %c128 = arith.constant 128 : index
    %c0_65 = arith.constant 0 : index
    %158 = vector.load %arg8[%c128, %c0_65] : memref<264x32xf32, #tpu.memory_space<vmem>>, vector<128x32xf32>
    %cst_66 = arith.constant dense<0.000000e+00> : vector<16x128xf32>
    %159 = tpu.matmul %157, %158, %cst_66 {dimension_numbers = #tpu.dot_dimension_numbers<[1], [1], [0], [0], [0, 0, 1, 0], [], []>} : vector<16x32xf32>, vector<128x32xf32>, vector<16x128xf32> -> vector<16x128xf32>
    %c7 = arith.constant 7 : index
    %c0_67 = arith.constant 0 : index
    %160 = vector.load %arg10[%c7, %c0_67] : memref<32x128xf32, #tpu.memory_space<vmem>>, vector<1x128xf32>
    %161 = vector.broadcast %160 : vector<1x128xf32> to vector<16x128xf32>
    %162 = arith.addf %159, %161 : vector<16x128xf32>
    %cst_68 = arith.constant 0.000000e+00 : f32
    %163 = vector.broadcast %cst_68 : f32 to vector<16x128xf32>
    %164 = arith.maximumf %162, %163 : vector<16x128xf32>
    %c0_69 = arith.constant 0 : index
    %c0_70 = arith.constant 0 : index
    %165 = vector.load %arg9[%c0_69, %c0_70] : memref<32x128xf32, #tpu.memory_space<vmem>>, vector<32x128xf32>
    %cst_71 = arith.constant dense<0.000000e+00> : vector<16x32xf32>
    %166 = tpu.matmul %164, %165, %cst_71 {dimension_numbers = #tpu.dot_dimension_numbers<[1], [1], [0], [0], [0, 0, 1, 0], [], []>} : vector<16x128xf32>, vector<32x128xf32>, vector<16x32xf32> -> vector<16x32xf32>
    %c8 = arith.constant 8 : index
    %c0_72 = arith.constant 0 : index
    %167 = vector.load %arg10[%c8, %c0_72] : memref<32x128xf32, #tpu.memory_space<vmem>>, vector<1x32xf32>
    %168 = vector.broadcast %167 : vector<1x32xf32> to vector<16x32xf32>
    %169 = arith.addf %166, %168 : vector<16x32xf32>
    %170 = arith.addf %157, %169 : vector<16x32xf32>
    %c9 = arith.constant 9 : index
    %c0_73 = arith.constant 0 : index
    %171 = vector.load %arg10[%c9, %c0_73] : memref<32x128xf32, #tpu.memory_space<vmem>>, vector<1x32xf32>
    %c10 = arith.constant 10 : index
    %c0_74 = arith.constant 0 : index
    %172 = vector.load %arg10[%c10, %c0_74] : memref<32x128xf32, #tpu.memory_space<vmem>>, vector<1x32xf32>
    %cst_75 = arith.constant dense<0.000000e+00> : vector<16xf32>
    %173 = vector.multi_reduction <add>, %170, %cst_75 [1] : vector<16x32xf32> to vector<16xf32>
    %174 = vector.shape_cast %173 : vector<16xf32> to vector<16x1xf32>
    %cst_76 = arith.constant 3.200000e+01 : f32
    %175 = vector.broadcast %cst_76 : f32 to vector<16x1xf32>
    %176 = arith.divf %174, %175 : vector<16x1xf32>
    %177 = vector.broadcast %176 : vector<16x1xf32> to vector<16x32xf32>
    %178 = arith.subf %170, %177 : vector<16x32xf32>
    %179 = arith.mulf %178, %178 : vector<16x32xf32>
    %cst_77 = arith.constant dense<0.000000e+00> : vector<16xf32>
    %180 = vector.multi_reduction <add>, %179, %cst_77 [1] : vector<16x32xf32> to vector<16xf32>
    %181 = vector.shape_cast %180 : vector<16xf32> to vector<16x1xf32>
    %cst_78 = arith.constant 3.200000e+01 : f32
    %182 = vector.broadcast %cst_78 : f32 to vector<16x1xf32>
    %183 = arith.divf %181, %182 : vector<16x1xf32>
    %184 = vector.broadcast %176 : vector<16x1xf32> to vector<16x32xf32>
    %185 = arith.subf %170, %184 : vector<16x32xf32>
    %cst_79 = arith.constant 9.99999974E-6 : f32
    %186 = vector.broadcast %cst_79 : f32 to vector<16x1xf32>
    %187 = arith.addf %183, %186 : vector<16x1xf32>
    %188 = math.sqrt %187 : vector<16x1xf32>
    %189 = vector.broadcast %188 : vector<16x1xf32> to vector<16x32xf32>
    %190 = arith.divf %185, %189 : vector<16x32xf32>
    %191 = vector.broadcast %171 : vector<1x32xf32> to vector<16x32xf32>
    %192 = arith.mulf %190, %191 : vector<16x32xf32>
    %193 = vector.broadcast %172 : vector<1x32xf32> to vector<16x32xf32>
    %194 = arith.addf %192, %193 : vector<16x32xf32>
    %c256 = arith.constant 256 : index
    %c0_80 = arith.constant 0 : index
    %195 = vector.load %arg8[%c256, %c0_80] : memref<264x32xf32, #tpu.memory_space<vmem>>, vector<8x32xf32>
    %cst_81 = arith.constant dense<0.000000e+00> : vector<8x16xf32>
    %196 = tpu.matmul %195, %194, %cst_81 {dimension_numbers = #tpu.dot_dimension_numbers<[1], [1], [0], [0], [0, 0, 1, 0], [], []>} : vector<8x32xf32>, vector<16x32xf32>, vector<8x16xf32> -> vector<8x16xf32>
    %c0_82 = arith.constant 0 : index
    %c0_83 = arith.constant 0 : index
    %197 = vector.load %arg11[%c0_82, %c0_83] : memref<8x1xf32, #tpu.memory_space<vmem>>, vector<8x1xf32>
    %198 = vector.broadcast %197 : vector<8x1xf32> to vector<8x16xf32>
    %199 = arith.addf %196, %198 : vector<8x16xf32>
    %200 = arith.mulf %199, %199 : vector<8x16xf32>
    %cst_84 = arith.constant dense<0.000000e+00> : vector<16xf32>
    %201 = vector.multi_reduction <add>, %200, %cst_84 [0] : vector<8x16xf32> to vector<16xf32>
    %202 = vector.shape_cast %201 : vector<16xf32> to vector<1x16xf32>
    %cst_85 = arith.constant dense<0.000000e+00> : vector<1xf32>
    %203 = vector.multi_reduction <add>, %202, %cst_85 [1] : vector<1x16xf32> to vector<1xf32>
    %204 = vector.shape_cast %203 : vector<1xf32> to vector<1x1xf32>
    %cst_86 = arith.constant 1.600000e+01 : f32
    %205 = vector.broadcast %cst_86 : f32 to vector<1x1xf32>
    %206 = arith.divf %204, %205 : vector<1x1xf32>
    %207 = math.sqrt %206 : vector<1x1xf32>
    %cst_87 = arith.constant 9.99999974E-6 : f32
    %208 = vector.broadcast %cst_87 : f32 to vector<1x1xf32>
    %209 = arith.maximumf %207, %208 : vector<1x1xf32>
    %210 = vector.broadcast %209 : vector<1x1xf32> to vector<8x16xf32>
    %211 = arith.divf %199, %210 : vector<8x16xf32>
    %cst_88 = arith.constant 0.425557494 : f32
    %212 = vector.broadcast %cst_88 : f32 to vector<8x16xf32>
    %213 = arith.mulf %212, %3 : vector<8x16xf32>
    %cst_89 = arith.constant 0.574442506 : f32
    %214 = vector.broadcast %cst_89 : f32 to vector<8x16xf32>
    %215 = arith.mulf %214, %211 : vector<8x16xf32>
    %216 = arith.addf %213, %215 : vector<8x16xf32>
    %217 = arith.mulf %216, %216 : vector<8x16xf32>
    %cst_90 = arith.constant dense<0.000000e+00> : vector<16xf32>
    %218 = vector.multi_reduction <add>, %217, %cst_90 [0] : vector<8x16xf32> to vector<16xf32>
    %219 = vector.shape_cast %218 : vector<16xf32> to vector<1x16xf32>
    %220 = math.sqrt %219 : vector<1x16xf32>
    %221 = arith.mulf %3, %3 : vector<8x16xf32>
    %cst_91 = arith.constant dense<0.000000e+00> : vector<16xf32>
    %222 = vector.multi_reduction <add>, %221, %cst_91 [0] : vector<8x16xf32> to vector<16xf32>
    %223 = vector.shape_cast %222 : vector<16xf32> to vector<1x16xf32>
    %224 = math.sqrt %223 : vector<1x16xf32>
    %cst_92 = arith.constant 9.99999993E-9 : f32
    %225 = vector.broadcast %cst_92 : f32 to vector<1x16xf32>
    %226 = arith.maximumf %220, %225 : vector<1x16xf32>
    %227 = arith.divf %224, %226 : vector<1x16xf32>
    %228 = vector.broadcast %227 : vector<1x16xf32> to vector<8x16xf32>
    %229 = arith.mulf %216, %228 : vector<8x16xf32>
    %c0_93 = arith.constant 0 : index
    %c0_94 = arith.constant 0 : index
    %c0_95 = arith.constant 0 : index
    %230 = vector.load %arg12[%c0_93, %c0_94, %c0_95] : memref<1x8x16xf32, #tpu.memory_space<vmem>>, vector<1x8x16xf32>
    %231 = vector.shape_cast %230 : vector<1x8x16xf32> to vector<8x16xf32>
    %232 = vector.shape_cast %229 : vector<8x16xf32> to vector<1x8x16xf32>
    tpu.vector_store %arg12[%c0_93, %c0_94, %c0_95], %232 {strides = array<i32>} : memref<1x8x16xf32, #tpu.memory_space<vmem>>, vector<1x8x16xf32>,
    return
  }
  func.func @transform_0(%arg0: i32) -> (i32, i32, i32) {
    %c0_i32 = arith.constant 0 : i32
    %c0_i32_0 = arith.constant 0 : i32
    %c0_i32_1 = arith.constant 0 : i32
    return %arg0, %c0_i32, %c0_i32_0 : i32, i32, i32
  }
  func.func @transform_1(%arg0: i32) -> (i32, i32, i32) {
    %c0_i32 = arith.constant 0 : i32
    %c0_i32_0 = arith.constant 0 : i32
    %c0_i32_1 = arith.constant 0 : i32
    return %arg0, %c0_i32, %c0_i32_0 : i32, i32, i32
  }
  func.func @transform_2(%arg0: i32) -> (i32, i32, i32) {
    %c0_i32 = arith.constant 0 : i32
    %c0_i32_0 = arith.constant 0 : i32
    %c0_i32_1 = arith.constant 0 : i32
    return %arg0, %c0_i32, %c0_i32_0 : i32, i32, i32
  }
  func.func @transform_3(%arg0: i32) -> (i32, i32, i32) {
    %c0_i32 = arith.constant 0 : i32
    %c0_i32_0 = arith.constant 0 : i32
    %c0_i32_1 = arith.constant 0 : i32
    return %arg0, %c0_i32, %c0_i32_0 : i32, i32, i32
  }
  func.func @transform_4(%arg0: i32) -> (i32, i32, i32) {
    %c0_i32 = arith.constant 0 : i32
    %c0_i32_0 = arith.constant 0 : i32
    %c0_i32_1 = arith.constant 0 : i32
    return %arg0, %c0_i32, %c0_i32_0 : i32, i32, i32
  }
  func.func @transform_5(%arg0: i32) -> (i32, i32) {
    %c0_i32 = arith.constant 0 : i32
    %c0_i32_0 = arith.constant 0 : i32
    %c0_i32_1 = arith.constant 0 : i32
    return %c0_i32, %c0_i32_0 : i32, i32
  }
  func.func @transform_6(%arg0: i32) -> (i32, i32) {
    %c0_i32 = arith.constant 0 : i32
    %c0_i32_0 = arith.constant 0 : i32
    %c0_i32_1 = arith.constant 0 : i32
    return %c0_i32, %c0_i32_0 : i32, i32
  }
  func.func @transform_7(%arg0: i32) -> (i32, i32) {
    %c0_i32 = arith.constant 0 : i32
    %c0_i32_0 = arith.constant 0 : i32
    %c0_i32_1 = arith.constant 0 : i32
    return %c0_i32, %c0_i32_0 : i32, i32
  }
  func.func @transform_8(%arg0: i32) -> (i32, i32) {
    %c0_i32 = arith.constant 0 : i32
    %c0_i32_0 = arith.constant 0 : i32
    %c0_i32_1 = arith.constant 0 : i32
    return %c0_i32, %c0_i32_0 : i32, i32
  }
  func.func @transform_9(%arg0: i32) -> (i32, i32) {
    %c0_i32 = arith.constant 0 : i32
    %c0_i32_0 = arith.constant 0 : i32
    %c0_i32_1 = arith.constant 0 : i32
    return %c0_i32, %c0_i32_0 : i32, i32
  }
  func.func @transform_10(%arg0: i32) -> (i32, i32) {
    %c0_i32 = arith.constant 0 : i32
    %c0_i32_0 = arith.constant 0 : i32
    %c0_i32_1 = arith.constant 0 : i32
    return %c0_i32, %c0_i32_0 : i32, i32
  }
  func.func @transform_11(%arg0: i32) -> (i32, i32, i32) {
    %c0_i32 = arith.constant 0 : i32
    %c0_i32_0 = arith.constant 0 : i32
    %c0_i32_1 = arith.constant 0 : i32
    return %arg0, %c0_i32, %c0_i32_0 : i32, i32, i32
  }
}

</mosaic_0001>

<llo_original>
// kernel: _forward_jit.1
$region0: #{_forward_jit.1}
  #allocation0 [shape = 'u32[]', space=smem, size = 0x4, offset = 0x4, fixed_abs, tag = 'smem constant byte address 0x4 - core index']
  #allocation1 [shape = 'u32[144,128]{1,0:T(1,128)}', space=vmem, size = 0x12000, scoped, tag = 'internal scratch']
  %s0 = inlined_call_operand.vmem [shape: f32[2,16,8], index: 0, kind: input, shape index: {}]
  %s1 = inlined_call_operand.vmem [shape: f32[2,8,16], index: 1, kind: input, shape index: {}]
  %s2 = inlined_call_operand.vmem [shape: f32[2,1,16], index: 2, kind: input, shape index: {}]
  %s3 = inlined_call_operand.vmem [shape: f32[2,8,32], index: 3, kind: input, shape index: {}]
  %s4 = inlined_call_operand.vmem [shape: f32[2,1,8], index: 4, kind: input, shape index: {}]
  %s5 = inlined_call_operand.vmem [shape: f32[16,16], index: 5, kind: input, shape index: {}]
  %s6 = inlined_call_operand.vmem [shape: f32[32,8], index: 6, kind: input, shape index: {}]
  %s7 = inlined_call_operand.vmem [shape: f32[264,32], index: 7, kind: input, shape index: {}]
  %s8 = inlined_call_operand.vmem [shape: f32[32,128], index: 8, kind: input, shape index: {}]
  %s9 = inlined_call_operand.vmem [shape: f32[32,128], index: 9, kind: input, shape index: {}]
  %s10 = inlined_call_operand.vmem [shape: f32[8,1], index: 10, kind: input, shape index: {}]
  %s11 = inlined_call_operand.hbm [shape: f32[2,8,16], index: 11, kind: output, shape index: {}]
  %s12 = sld [smem:[#allocation0]]
  $region77: #{_forward_jit.1} parent=0
    _
  %s14 = ssub.s32 1, %s12
  %s15 = scalar_select 0, %s14, %s12
  $region1: #{_forward_jit.1} parent=0
    #allocation2 [shape = 'u8[8192]{0}', space=vmem, size = 0x2000, scoped, tag = 'output window, operand 0']
    #allocation3 [shape = 's32[2]{0}', space=sflag, size = 0x8, scoped, tag = 'scoped memory for _forward_jit.1']
    %16 = vsyncpa [#allocation3], 0
    %s17 = scalar_lea.sflag [#allocation3], 1
    %18 = vsyncpa %s17, 0
    loop: start=0, step=1, limit=4
    $region2: #{_forward_jit.1} parent=1 // loop_pre_header
      _
    $region3: #{_forward_jit.1} parent=1 // loop_header
      %s20 = sphi 0, %s24
      %p21 = scmp.ge.s32.totalorder %s20, 4
      %s30 = sphi 0, %s32
      %s33 = sphi 0, %s30
      %s34 = sphi 0, %s33
      %s50 = sphi 0, %s34
      %s56 = sphi 0, %s58
      %s59 = sphi 0, %s56
      %s60 = sphi 0, %s59
      %s76 = sphi 0, %s60
      %s82 = sphi 0, %s84
      %s85 = sphi 0, %s82
      %s86 = sphi 0, %s85
      %s102 = sphi 0, %s86
      %s108 = sphi 0, %s110
      %s111 = sphi 0, %s108
      %s112 = sphi 0, %s111
      %s128 = sphi 0, %s112
      %s134 = sphi 0, %s136
      %s137 = sphi 0, %s134
      %s138 = sphi 0, %s137
      %s154 = sphi 0, %s138
      %s158 = sphi 0, %s158
      %s160 = sphi 0, %s158
      %s161 = sphi 0, %s160
      %s175 = sphi 0, %s161
      %s179 = sphi 0, %s179
      %s181 = sphi 0, %s179
      %s182 = sphi 0, %s181
      %s196 = sphi 0, %s182
      %s200 = sphi 0, %s200
      %s202 = sphi 0, %s200
      %s203 = sphi 0, %s202
      %s217 = sphi 0, %s203
      %s221 = sphi 0, %s221
      %s223 = sphi 0, %s221
      %s224 = sphi 0, %s223
      %s238 = sphi 0, %s224
      %s242 = sphi 0, %s242
      %s244 = sphi 0, %s242
      %s245 = sphi 0, %s244
      %s259 = sphi 0, %s245
      %s263 = sphi 0, %s263
      %s265 = sphi 0, %s263
      %s266 = sphi 0, %s265
      %s280 = sphi 0, %s266
      %s286 = sphi 0, %s288
      %s289 = sphi 0, %s286
      %s290 = sphi 0, %s289
      %s306 = sphi 0, %s290
    $region4: #{_forward_jit.1} parent=1 // loop_header_branch
      %23 = sbr.rel (%p21) target = $region8
    $region5: #{_forward_jit.1} parent=1 // loop_body
      %s25 = ssub.s32 %s20, 1
      %s26 = ssub.s32 %s20, 2
      %s27 = sadd.s32 %s20, 1
      %s28 = ssub.s32 %s20, %s27
      %p29 = scmp.eq.s32.totalorder %s28, 0
      %s31 = sadd.s32 %s30, 1
      %s32 = scalar_select %p29, %s30, %s31
      %p35 = pneg %p29
      %p36 = scmp.eq.s32.totalorder %s20, 1
      %p37 = por %p35, %p36
      %p38 = scmp.ne.s32.totalorder %s30, %s33
      %p39 = scmp.eq.s32.totalorder %s20, 0
      %p40 = por %p38, %p39
      %p41 = scmp.ne.s32.totalorder %s30, %s33
      %p42 = scmp.eq.s32.totalorder %s25, 1
      %p43 = por %p41, %p42
      %p44 = scmp.ne.s32.totalorder %s33, %s34
      %p45 = scmp.eq.s32.totalorder %s25, 0
      %p46 = por %p44, %p45
      %p47 = scmp.ne.s32.totalorder %s33, %s34
      %p48 = scmp.eq.s32.totalorder %s26, 1
      %p49 = por %p47, %p48
      %p51 = scmp.ne.s32.totalorder %s34, %s50
      %p52 = scmp.eq.s32.totalorder %s26, 0
      %p53 = por %p51, %p52
      %s54 = ssub.s32 %s20, %s27
      %p55 = scmp.eq.s32.totalorder %s54, 0
      %s57 = sadd.s32 %s56, 1
      %s58 = scalar_select %p55, %s56, %s57
      %p61 = pneg %p55
      %p62 = scmp.eq.s32.totalorder %s20, 1
      %p63 = por %p61, %p62
      %p64 = scmp.ne.s32.totalorder %s56, %s59
      %p65 = scmp.eq.s32.totalorder %s20, 0
      %p66 = por %p64, %p65
      %p67 = scmp.ne.s32.totalorder %s56, %s59
      %p68 = scmp.eq.s32.totalorder %s25, 1
      %p69 = por %p67, %p68
      %p70 = scmp.ne.s32.totalorder %s59, %s60
      %p71 = scmp.eq.s32.totalorder %s25, 0
      %p72 = por %p70, %p71
      %p73 = scmp.ne.s32.totalorder %s59, %s60
      %p74 = scmp.eq.s32.totalorder %s26, 1
      %p75 = por %p73, %p74
      %p77 = scmp.ne.s32.totalorder %s60, %s76
      %p78 = scmp.eq.s32.totalorder %s26, 0
      %p79 = por %p77, %p78
      %s80 = ssub.s32 %s20, %s27
      %p81 = scmp.eq.s32.totalorder %s80, 0
      %s83 = sadd.s32 %s82, 1
      %s84 = scalar_select %p81, %s82, %s83
      %p87 = pneg %p81
      %p88 = scmp.eq.s32.totalorder %s20, 1
      %p89 = por %p87, %p88
      %p90 = scmp.ne.s32.totalorder %s82, %s85
      %p91 = scmp.eq.s32.totalorder %s20, 0
      %p92 = por %p90, %p91
      %p93 = scmp.ne.s32.totalorder %s82, %s85
      %p94 = scmp.eq.s32.totalorder %s25, 1
      %p95 = por %p93, %p94
      %p96 = scmp.ne.s32.totalorder %s85, %s86
      %p97 = scmp.eq.s32.totalorder %s25, 0
      %p98 = por %p96, %p97
      %p99 = scmp.ne.s32.totalorder %s85, %s86
      %p100 = scmp.eq.s32.totalorder %s26, 1
      %p101 = por %p99, %p100
      %p103 = scmp.ne.s32.totalorder %s86, %s102
      %p104 = scmp.eq.s32.totalorder %s26, 0
      %p105 = por %p103, %p104
      %s106 = ssub.s32 %s20, %s27
      %p107 = scmp.eq.s32.totalorder %s106, 0
      %s109 = sadd.s32 %s108, 1
      %s110 = scalar_select %p107, %s108, %s109
      %p113 = pneg %p107
      %p114 = scmp.eq.s32.totalorder %s20, 1
      %p115 = por %p113, %p114
      %p116 = scmp.ne.s32.totalorder %s108, %s111
      %p117 = scmp.eq.s32.totalorder %s20, 0
      %p118 = por %p116, %p117
      %p119 = scmp.ne.s32.totalorder %s108, %s111
      %p120 = scmp.eq.s32.totalorder %s25, 1
      %p121 = por %p119, %p120
      %p122 = scmp.ne.s32.totalorder %s111, %s112
      %p123 = scmp.eq.s32.totalorder %s25, 0
      %p124 = por %p122, %p123
      %p125 = scmp.ne.s32.totalorder %s111, %s112
      %p126 = scmp.eq.s32.totalorder %s26, 1
      %p127 = por %p125, %p126
      %p129 = scmp.ne.s32.totalorder %s112, %s128
      %p130 = scmp.eq.s32.totalorder %s26, 0
      %p131 = por %p129, %p130
      %s132 = ssub.s32 %s20, %s27
      %p133 = scmp.eq.s32.totalorder %s132, 0
      %s135 = sadd.s32 %s134, 1
      %s136 = scalar_select %p133, %s134, %s135
      %p139 = pneg %p133
      %p140 = scmp.eq.s32.totalorder %s20, 1
      %p141 = por %p139, %p140
      %p142 = scmp.ne.s32.totalorder %s134, %s137
      %p143 = scmp.eq.s32.totalorder %s20, 0
      %p144 = por %p142, %p143
      %p145 = scmp.ne.s32.totalorder %s134, %s137
      %p146 = scmp.eq.s32.totalorder %s25, 1
      %p147 = por %p145, %p146
      %p148 = scmp.ne.s32.totalorder %s137, %s138
      %p149 = scmp.eq.s32.totalorder %s25, 0
      %p150 = por %p148, %p149
      %p151 = scmp.ne.s32.totalorder %s137, %s138
      %p152 = scmp.eq.s32.totalorder %s26, 1
      %p153 = por %p151, %p152
      %p155 = scmp.ne.s32.totalorder %s138, %s154
      %p156 = scmp.eq.s32.totalorder %s26, 0
      %p157 = por %p155, %p156
      %s159 = sadd.s32 %s158, 1
      %p162 = scmp.eq.s32.totalorder %s20, 1
      %p163 = scmp.ne.s32.totalorder %s158, %s160
      %p164 = scmp.eq.s32.totalorder %s20, 0
      %p165 = por %p163, %p164
      %p166 = scmp.ne.s32.totalorder %s158, %s160
      %p167 = scmp.eq.s32.totalorder %s25, 1
      %p168 = por %p166, %p167
      %p169 = scmp.ne.s32.totalorder %s160, %s161
      %p170 = scmp.eq.s32.totalorder %s25, 0
      %p171 = por %p169, %p170
      %p172 = scmp.ne.s32.totalorder %s160, %s161
      %p173 = scmp.eq.s32.totalorder %s26, 1
      %p174 = por %p172, %p173
      %p176 = scmp.ne.s32.totalorder %s161, %s175
      %p177 = scmp.eq.s32.totalorder %s26, 0
      %p178 = por %p176, %p177
      %s180 = sadd.s32 %s179, 1
      %p183 = scmp.eq.s32.totalorder %s20, 1
      %p184 = scmp.ne.s32.totalorder %s179, %s181
      %p185 = scmp.eq.s32.totalorder %s20, 0
      %p186 = por %p184, %p185
      %p187 = scmp.ne.s32.totalorder %s179, %s181
      %p188 = scmp.eq.s32.totalorder %s25, 1
      %p189 = por %p187, %p188
      %p190 = scmp.ne.s32.totalorder %s181, %s182
      %p191 = scmp.eq.s32.totalorder %s25, 0
      %p192 = por %p190, %p191
      %p193 = scmp.ne.s32.totalorder %s181, %s182
      %p194 = scmp.eq.s32.totalorder %s26, 1
      %p195 = por %p193, %p194
      %p197 = scmp.ne.s32.totalorder %s182, %s196
      %p198 = scmp.eq.s32.totalorder %s26, 0
      %p199 = por %p197, %p198
      %s201 = sadd.s32 %s200, 1
      %p204 = scmp.eq.s32.totalorder %s20, 1
      %p205 = scmp.ne.s32.totalorder %s200, %s202
      %p206 = scmp.eq.s32.totalorder %s20, 0
      %p207 = por %p205, %p206
      %p208 = scmp.ne.s32.totalorder %s200, %s202
      %p209 = scmp.eq.s32.totalorder %s25, 1
      %p210 = por %p208, %p209
      %p211 = scmp.ne.s32.totalorder %s202, %s203
      %p212 = scmp.eq.s32.totalorder %s25, 0
      %p213 = por %p211, %p212
      %p214 = scmp.ne.s32.totalorder %s202, %s203
      %p215 = scmp.eq.s32.totalorder %s26, 1
      %p216 = por %p214, %p215
      %p218 = scmp.ne.s32.totalorder %s203, %s217
      %p219 = scmp.eq.s32.totalorder %s26, 0
      %p220 = por %p218, %p219
      %s222 = sadd.s32 %s221, 1
      %p225 = scmp.eq.s32.totalorder %s20, 1
      %p226 = scmp.ne.s32.totalorder %s221, %s223
      %p227 = scmp.eq.s32.totalorder %s20, 0
      %p228 = por %p226, %p227
      %p229 = scmp.ne.s32.totalorder %s221, %s223
      %p230 = scmp.eq.s32.totalorder %s25, 1
      %p231 = por %p229, %p230
      %p232 = scmp.ne.s32.totalorder %s223, %s224
      %p233 = scmp.eq.s32.totalorder %s25, 0
      %p234 = por %p232, %p233
      %p235 = scmp.ne.s32.totalorder %s223, %s224
      %p236 = scmp.eq.s32.totalorder %s26, 1
      %p237 = por %p235, %p236
      %p239 = scmp.ne.s32.totalorder %s224, %s238
      %p240 = scmp.eq.s32.totalorder %s26, 0
      %p241 = por %p239, %p240
      %s243 = sadd.s32 %s242, 1
      %p246 = scmp.eq.s32.totalorder %s20, 1
      %p247 = scmp.ne.s32.totalorder %s242, %s244
      %p248 = scmp.eq.s32.totalorder %s20, 0
      %p249 = por %p247, %p248
      %p250 = scmp.ne.s32.totalorder %s242, %s244
      %p251 = scmp.eq.s32.totalorder %s25, 1
      %p252 = por %p250, %p251
      %p253 = scmp.ne.s32.totalorder %s244, %s245
      %p254 = scmp.eq.s32.totalorder %s25, 0
      %p255 = por %p253, %p254
      %p256 = scmp.ne.s32.totalorder %s244, %s245
      %p257 = scmp.eq.s32.totalorder %s26, 1
      %p258 = por %p256, %p257
      %p260 = scmp.ne.s32.totalorder %s245, %s259
      %p261 = scmp.eq.s32.totalorder %s26, 0
      %p262 = por %p260, %p261
      %s264 = sadd.s32 %s263, 1
      %p267 = scmp.eq.s32.totalorder %s20, 1
      %p268 = scmp.ne.s32.totalorder %s263, %s265
      %p269 = scmp.eq.s32.totalorder %s20, 0
      %p270 = por %p268, %p269
      %p271 = scmp.ne.s32.totalorder %s263, %s265
      %p272 = scmp.eq.s32.totalorder %s25, 1
      %p273 = por %p271, %p272
      %p274 = scmp.ne.s32.totalorder %s265, %s266
      %p275 = scmp.eq.s32.totalorder %s25, 0
      %p276 = por %p274, %p275
      %p277 = scmp.ne.s32.totalorder %s265, %s266
      %p278 = scmp.eq.s32.totalorder %s26, 1
      %p279 = por %p277, %p278
      %p281 = scmp.ne.s32.totalorder %s266, %s280
      %p282 = scmp.eq.s32.totalorder %s26, 0
      %p283 = por %p281, %p282
      %s284 = ssub.s32 %s20, %s27
      %p285 = scmp.eq.s32.totalorder %s284, 0
      %s287 = sadd.s32 %s286, 1
      %s288 = scalar_select %p285, %s286, %s287
      %p291 = pneg %p285
      %p292 = scmp.eq.s32.totalorder %s20, 1
      %p293 = por %p291, %p292
      %p294 = scmp.ne.s32.totalorder %s286, %s289
      %p295 = scmp.eq.s32.totalorder %s20, 0
      %p296 = por %p294, %p295
      %p297 = scmp.ne.s32.totalorder %s286, %s289
      %p298 = scmp.eq.s32.totalorder %s25, 1
      %p299 = por %p297, %p298
      %p300 = scmp.ne.s32.totalorder %s289, %s290
      %p301 = scmp.eq.s32.totalorder %s25, 0
      %p302 = por %p300, %p301
      %p303 = scmp.ne.s32.totalorder %s289, %s290
      %p304 = scmp.eq.s32.totalorder %s26, 1
      %p305 = por %p303, %p304
      %p307 = scmp.ne.s32.totalorder %s290, %s306
      %p308 = scmp.eq.s32.totalorder %s26, 0
      %p309 = por %p307, %p308
      %p310 = scmp.le.s32.totalorder 1, %s20
      %p311 = scmp.lt.s32.totalorder %s20, 3
      %p312 = pnand %p310, %p311
      %p313 = pneg %p312
      // Predicated region
      $region9: #{_forward_jit.1} parent=5 // pred_check
        _
      $region10: #{_forward_jit.1} parent=5 // pred_check_branch
        %315 = sbr.rel (%p312) target = $region12
      $region11: #{_forward_jit.1} parent=5 // pred_region
        %s316 = ssub.s32 %s20, 1
        // Predicated region
        $region13: #{_forward_jit.1} parent=11 // pred_check
          %p317 = pneg %p171
        $region14: #{_forward_jit.1} parent=11 // pred_check_branch
          %319 = sbr.rel (%p317) target = $region16
        $region15: #{_forward_jit.1} parent=11 // pred_region
          _
        $region16: #{_forward_jit.1} parent=11 // pred_fallthru
          _
        // Predicated region
        $region17: #{_forward_jit.1} parent=11 // pred_check
          %p320 = pneg %p192
        $region18: #{_forward_jit.1} parent=11 // pred_check_branch
          %322 = sbr.rel (%p320) target = $region20
        $region19: #{_forward_jit.1} parent=11 // pred_region
          _
        $region20: #{_forward_jit.1} parent=11 // pred_fallthru
          _
        // Predicated region
        $region21: #{_forward_jit.1} parent=11 // pred_check
          %p323 = pneg %p213
        $region22: #{_forward_jit.1} parent=11 // pred_check_branch
          %325 = sbr.rel (%p323) target = $region24
        $region23: #{_forward_jit.1} parent=11 // pred_region
          _
        $region24: #{_forward_jit.1} parent=11 // pred_fallthru
          _
        // Predicated region
        $region25: #{_forward_jit.1} parent=11 // pred_check
          %p326 = pneg %p234
        $region26: #{_forward_jit.1} parent=11 // pred_check_branch
          %328 = sbr.rel (%p326) target = $region28
        $region27: #{_forward_jit.1} parent=11 // pred_region
          _
        $region28: #{_forward_jit.1} parent=11 // pred_fallthru
          _
        // Predicated region
        $region29: #{_forward_jit.1} parent=11 // pred_check
          %p329 = pneg %p255
        $region30: #{_forward_jit.1} parent=11 // pred_check_branch
          %331 = sbr.rel (%p329) target = $region32
        $region31: #{_forward_jit.1} parent=11 // pred_region
          _
        $region32: #{_forward_jit.1} parent=11 // pred_fallthru
          _
        // Predicated region
        $region33: #{_forward_jit.1} parent=11 // pred_check
          %p332 = pneg %p276
        $region34: #{_forward_jit.1} parent=11 // pred_check_branch
          %334 = sbr.rel (%p332) target = $region36
        $region35: #{_forward_jit.1} parent=11 // pred_region
          _
        $region36: #{_forward_jit.1} parent=11 // pred_fallthru
          _
      $region12: #{_forward_jit.1} parent=5 // pred_fallthru
        _
      %p335 = scmp.lt.s32.totalorder %s20, 2
      // Predicated region
      $region37: #{_forward_jit.1} parent=5 // pred_check
        %p336 = pneg %p335
      $region38: #{_forward_jit.1} parent=5 // pred_check_branch
        %338 = sbr.rel (%p336) target = $region40
      $region39: #{_forward_jit.1} parent=5 // pred_region
        // Predicated region
        $region41: #{_forward_jit.1} parent=39 // pred_check
          %p339 = pneg %p40
        $region42: #{_forward_jit.1} parent=39 // pred_check_branch
          %341 = sbr.rel (%p339) target = $region44
        $region43: #{_forward_jit.1} parent=39 // pred_region
          %p342 = scmp.lt.s32.totalorder %s20, 1
          %s343 = scalar_select %p342, %s20, 1
          %s344 = smul.addr %s343, 2
          %s345 = smul.addr %s344, 8
          %s346 = scalar_lea.vmem %s0, %s345
        $region44: #{_forward_jit.1} parent=39 // pred_fallthru
          _
        // Predicated region
        $region45: #{_forward_jit.1} parent=39 // pred_check
          %p347 = pneg %p66
        $region46: #{_forward_jit.1} parent=39 // pred_check_branch
          %349 = sbr.rel (%p347) target = $region48
        $region47: #{_forward_jit.1} parent=39 // pred_region
          %p350 = scmp.lt.s32.totalorder %s20, 1
          %s351 = scalar_select %p350, %s20, 1
          %s352 = smul.addr %s351, 8
          %s353 = scalar_lea.vmem %s1, %s352
        $region48: #{_forward_jit.1} parent=39 // pred_fallthru
          _
        // Predicated region
        $region49: #{_forward_jit.1} parent=39 // pred_check
          %p354 = pneg %p92
        $region50: #{_forward_jit.1} parent=39 // pred_check_branch
          %356 = sbr.rel (%p354) target = $region52
        $region51: #{_forward_jit.1} parent=39 // pred_region
          %p357 = scmp.lt.s32.totalorder %s20, 1
          %s358 = scalar_select %p357, %s20, 1
          %s359 = scalar_lea.vmem %s2, %s358
        $region52: #{_forward_jit.1} parent=39 // pred_fallthru
          _
        // Predicated region
        $region53: #{_forward_jit.1} parent=39 // pred_check
          %p360 = pneg %p118
        $region54: #{_forward_jit.1} parent=39 // pred_check_branch
          %362 = sbr.rel (%p360) target = $region56
        $region55: #{_forward_jit.1} parent=39 // pred_region
          %p363 = scmp.lt.s32.totalorder %s20, 1
          %s364 = scalar_select %p363, %s20, 1
          %s365 = smul.addr %s364, 8
          %s366 = scalar_lea.vmem %s3, %s365
        $region56: #{_forward_jit.1} parent=39 // pred_fallthru
          _
        // Predicated region
        $region57: #{_forward_jit.1} parent=39 // pred_check
          %p367 = pneg %p144
        $region58: #{_forward_jit.1} parent=39 // pred_check_branch
          %369 = sbr.rel (%p367) target = $region60
        $region59: #{_forward_jit.1} parent=39 // pred_region
          %p370 = scmp.lt.s32.totalorder %s20, 1
          %s371 = scalar_select %p370, %s20, 1
          %s372 = scalar_lea.vmem %s4, %s371
        $region60: #{_forward_jit.1} parent=39 // pred_fallthru
          _
      $region40: #{_forward_jit.1} parent=5 // pred_fallthru
        _
      %p373 = scmp.le.s32.totalorder 1, %s20
      %p374 = scmp.lt.s32.totalorder %s20, 3
      %p375 = pnand %p373, %p374
      %p376 = pneg %p375
      // Predicated region
      $region61: #{_forward_jit.1} parent=5 // pred_check
        _
      $region62: #{_forward_jit.1} parent=5 // pred_check_branch
        %378 = sbr.rel (%p375) target = $region64
      $region63: #{_forward_jit.1} parent=5 // pred_region
        %s379 = ssub.s32 %s20, 1
        %p380 = scmp.lt.s32.totalorder %s25, 1
        %s381 = scalar_select %p380, %s25, 1
        %s382 = smul.addr %s381, 2
        %s383 = smul.addr %s382, 8
        %s384 = scalar_lea.vmem %s0, %s383
        %p385 = pneg %p46
        %p386 = pneg %p43
        %p387 = scmp.lt.s32.totalorder %s25, 1
        %s388 = scalar_select %p387, %s25, 1
        %s389 = smul.addr %s388, 8
        %s390 = scalar_lea.vmem %s1, %s389
        %p391 = pneg %p72
        %p392 = pneg %p69
        %p393 = scmp.lt.s32.totalorder %s25, 1
        %s394 = scalar_select %p393, %s25, 1
        %s395 = scalar_lea.vmem %s2, %s394
        %p396 = pneg %p98
        %p397 = pneg %p95
        %p398 = scmp.lt.s32.totalorder %s25, 1
        %s399 = scalar_select %p398, %s25, 1
        %s400 = smul.addr %s399, 8
        %s401 = scalar_lea.vmem %s3, %s400
        %p402 = pneg %p124
        %p403 = pneg %p121
        %p404 = scmp.lt.s32.totalorder %s25, 1
        %s405 = scalar_select %p404, %s25, 1
        %s406 = scalar_lea.vmem %s4, %s405
        %p407 = pneg %p150
        %p408 = pneg %p147
        %p409 = pneg %p171
        %p410 = pneg %p168
        %p411 = pneg %p192
        %p412 = pneg %p189
        %p413 = pneg %p213
        %p414 = pneg %p210
        %p415 = pneg %p234
        %p416 = pneg %p231
        %p417 = pneg %p255
        %p418 = pneg %p252
        %p419 = pneg %p276
        %p420 = pneg %p273
        %p421 = pneg %p302
        %p422 = pneg %p299
        %s423 = sand.u32 %s289, 1
        %s424 = scalar_lea.sflag [#allocation3], %s423
        %s425 = sand.u32 %s289, 1
        %s426 = smul.addr %s425, 8
        %s427 = scalar_lea.vmem [#allocation2], %s426
        %p428 = scmp.lt.s32.totalorder %s25, 1
        %s429 = scalar_select %p428, %s25, 1
        %s430 = smul.addr %s429, 2
        %s431 = smul.addr %s430, 8
        %s432 = scalar_lea.vmem %s0, %s431
        %p433 = scmp.lt.s32.totalorder %s25, 1
        %s434 = scalar_select %p433, %s25, 1
        %s435 = smul.addr %s434, 8
        %s436 = scalar_lea.vmem %s1, %s435
        %p437 = scmp.lt.s32.totalorder %s25, 1
        %s438 = scalar_select %p437, %s25, 1
        %s439 = scalar_lea.vmem %s2, %s438
        %p440 = scmp.lt.s32.totalorder %s25, 1
        %s441 = scalar_select %p440, %s25, 1
        %s442 = smul.addr %s441, 8
        %s443 = scalar_lea.vmem %s3, %s442
        %p444 = scmp.lt.s32.totalorder %s25, 1
        %s445 = scalar_select %p444, %s25, 1
        %s446 = scalar_lea.vmem %s4, %s445
        %v447 = vld [vmem:[%s432] sm:$0xff]
        %v448 = vld [vmem:[%s432 + $0x8] sm:$0xff]
        %v449 = vld [vmem:[%s436] sm:$0xff]
        %v450 = vld [vmem:[%s439] sm:$0x1]
        %v451 = vld [vmem:[%s443] sm:$0xff]
        %v452 = vld [vmem:[%s446] sm:$0x1]
        %v453 = vld [vmem:[%s5] sm:$0xff]
        %v454 = vld [vmem:[%s5 + $0x8] sm:$0xff]
        %v455 = vld [vmem:[%s9] sm:$0x1]
        %vm456 = vcmask 130048
        %v458 = vsel %vm456, %v450, 0
        %v461 = vsel %vm456, %v453, 0
        %v464 = vsel %vm456, %v454, 0
        %466 = vmatprep.subr.mxu0 0.0
        %467 = vmatpush1.xpose.msra.mxu0 0.0
        %468 = vmatprep.subr.mxu0 0.0
        %469 = vmatpush1.xpose.msra.mxu0 0.0
        %470 = vmatprep.subr.mxu0 0.0
        %471 = vmatpush1.xpose.msra.mxu0 0.0
        %472 = vmatprep.subr.mxu0 0.0
        %473 = vmatpush1.xpose.msra.mxu0 0.0
        %474 = vmatprep.subr.mxu0 0.0
        %475 = vmatpush1.xpose.msra.mxu0 0.0
        %476 = vmatprep.subr.mxu0 0.0
        %477 = vmatpush1.xpose.msra.mxu0 0.0
        %478 = vmatprep.subr.mxu0 0.0
        %479 = vmatpush1.xpose.msra.mxu0 0.0
        %480 = vmatprep.subr.mxu0 0.0
        %481 = vmatpush1.xpose.msra.mxu0 0.0
        %482 = vmatprep.subr.mxu0 0.0
        %483 = vmatpush1.xpose.msra.mxu0 0.0
        %484 = vmatprep.subr.mxu0 0.0
        %485 = vmatpush1.xpose.msra.mxu0 0.0
        %486 = vmatprep.subr.mxu0 0.0
        %487 = vmatpush1.xpose.msra.mxu0 0.0
        %488 = vmatprep.subr.mxu0 0.0
        %489 = vmatpush1.xpose.msra.mxu0 0.0
        %490 = vmatprep.subr.mxu0 0.0
        %491 = vmatpush1.xpose.msra.mxu0 0.0
        %492 = vmatprep.subr.mxu0 0.0
        %493 = vmatpush1.xpose.msra.mxu0 0.0
        %494 = vmatprep.subr.mxu0 0.0
        %495 = vmatpush1.xpose.msra.mxu0 %v464
        %496 = vmatprep.subr.mxu0 0.0
        %497 = vmatpush1.xpose.msra.mxu0 %v461
        %498 = vmatprep.subr.mxu0 0.0
        %499 = vmatpush2.xpose.msra.mxu0 0.0
        %500 = vmatprep.subr.mxu0 0.0
        %501 = vmatpush2.xpose.msra.mxu0 0.0
        %502 = vmatprep.subr.mxu0 0.0
        %503 = vmatpush2.xpose.msra.mxu0 0.0
        %504 = vmatprep.subr.mxu0 0.0
        %505 = vmatpush2.xpose.msra.mxu0 0.0
        %506 = vmatprep.subr.mxu0 0.0
        %507 = vmatpush2.xpose.msra.mxu0 0.0
        %508 = vmatprep.subr.mxu0 0.0
        %509 = vmatpush2.xpose.msra.mxu0 0.0
        %510 = vmatprep.subr.mxu0 0.0
        %511 = vmatpush2.xpose.msra.mxu0 0.0
        %512 = vmatprep.subr.mxu0 0.0
        %513 = vmatpush2.xpose.msra.mxu0 0.0
        %514 = vmatprep.subr.mxu0 0.0
        %515 = vmatpush2.xpose.msra.mxu0 0.0
        %516 = vmatprep.subr.mxu0 0.0
        %517 = vmatpush2.xpose.msra.mxu0 0.0
        %518 = vmatprep.subr.mxu0 0.0
        %519 = vmatpush2.xpose.msra.mxu0 0.0
        %520 = vmatprep.subr.mxu0 0.0
        %521 = vmatpush2.xpose.msra.mxu0 0.0
        %522 = vmatprep.subr.mxu0 0.0
        %523 = vmatpush2.xpose.msra.mxu0 0.0
        %524 = vmatprep.subr.mxu0 0.0
        %525 = vmatpush2.xpose.msra.mxu0 0.0
        %526 = vmatprep.subr.mxu0 0.0
        %527 = vmatpush2.xpose.msra.mxu0 0.0
        %528 = vmatprep.subr.mxu0 0.0
        %529 = vmatpush2.xpose.msra.mxu0 0.0
        %530 = vmatprep.mubr.f32.mxu0 0.0
        %531 = vmatmul.mubr.f32.gmra.mxu0 %v458
        %v532 = vpop.f32.mrf.mxu0
        %v533 = vadd.f32 %v455, %v532
        %v534 = vpop.f32.mrf.mxu0
        %535 = vdwg.mxu0
        %v536 = vmul.f32 %v533, 0.0033333334
        %v537 = vtanh.pop %v536
        %v538 = vmul.f32 %v537, 300.0
        %v539 = vlaneseq
        %v540 = vshrl.u32 %v539, 7
        %v541 = vsub.s32 0, %v540
        %v542 = vrot.slane %v538, %v541
        %v543 = vmul.f32 %v542, %v447
        %v544 = vmul.f32 %v542, %v448
        %546 = vrot.lane.b32.xlu0 %v542, 120
        %v547 = vpop.permute.xlu0 %546
        %v549 = vadd.f32 %v543, %v547
        %v550 = vadd.f32 %v544, %v547
        %v551 = vmul.f32 %v549, 0.05
        %v552 = vmul.f32 %v550, 0.05
        %v553 = vld [vmem:[%s6] sm:$0xff]
        %v554 = vld [vmem:[%s6 + $0x8] sm:$0xff]
        %v555 = vld [vmem:[%s6 + $0x10] sm:$0xff]
        %v556 = vld [vmem:[%s6 + $0x18] sm:$0xff]
        %v557 = vld [vmem:[%s9 + $0x1] sm:$0x1]
        %v558 = vlaneseq
        %v559 = vshrl.u32 %v558, 7
        %v560 = vsub.s32 0, %v559
        %v561 = vrot.slane %v557, %v560
        %vm562 = vcmask 64512
        %v564 = vsel %vm562, %v551, 0
        %v567 = vsel %vm562, %v552, 0
        %v570 = vsel %vm562, %v553, 0
        %v573 = vsel %vm562, %v554, 0
        %v576 = vsel %vm562, %v555, 0
        %v579 = vsel %vm562, %v556, 0
        %581 = vmatprep.subr.mxu0 0.0
        %582 = vmatpush1.xpose.msra.mxu0 0.0
        %583 = vmatprep.subr.mxu0 0.0
        %584 = vmatpush1.xpose.msra.mxu0 0.0
        %585 = vmatprep.subr.mxu0 0.0
        %586 = vmatpush1.xpose.msra.mxu0 0.0
        %587 = vmatprep.subr.mxu0 0.0
        %588 = vmatpush1.xpose.msra.mxu0 0.0
        %589 = vmatprep.subr.mxu0 0.0
        %590 = vmatpush1.xpose.msra.mxu0 0.0
        %591 = vmatprep.subr.mxu0 0.0
        %592 = vmatpush1.xpose.msra.mxu0 0.0
        %593 = vmatprep.subr.mxu0 0.0
        %594 = vmatpush1.xpose.msra.mxu0 0.0
        %595 = vmatprep.subr.mxu0 0.0
        %596 = vmatpush1.xpose.msra.mxu0 0.0
        %597 = vmatprep.subr.mxu0 0.0
        %598 = vmatpush1.xpose.msra.mxu0 0.0
        %599 = vmatprep.subr.mxu0 0.0
        %600 = vmatpush1.xpose.msra.mxu0 0.0
        %601 = vmatprep.subr.mxu0 0.0
        %602 = vmatpush1.xpose.msra.mxu0 0.0
        %603 = vmatprep.subr.mxu0 0.0
        %604 = vmatpush1.xpose.msra.mxu0 0.0
        %605 = vmatprep.subr.mxu0 0.0
        %606 = vmatpush1.xpose.msra.mxu0 %v579
        %607 = vmatprep.subr.mxu0 0.0
        %608 = vmatpush1.xpose.msra.mxu0 %v576
        %609 = vmatprep.subr.mxu0 0.0
        %610 = vmatpush1.xpose.msra.mxu0 %v573
        %611 = vmatprep.subr.mxu0 0.0
        %612 = vmatpush1.xpose.msra.mxu0 %v570
        %613 = vmatprep.subr.mxu0 0.0
        %614 = vmatpush2.xpose.msra.mxu0 0.0
        %615 = vmatprep.subr.mxu0 0.0
        %616 = vmatpush2.xpose.msra.mxu0 0.0
        %617 = vmatprep.subr.mxu0 0.0
        %618 = vmatpush2.xpose.msra.mxu0 0.0
        %619 = vmatprep.subr.mxu0 0.0
        %620 = vmatpush2.xpose.msra.mxu0 0.0
        %621 = vmatprep.subr.mxu0 0.0
        %622 = vmatpush2.xpose.msra.mxu0 0.0
        %623 = vmatprep.subr.mxu0 0.0
        %624 = vmatpush2.xpose.msra.mxu0 0.0
        %625 = vmatprep.subr.mxu0 0.0
        %626 = vmatpush2.xpose.msra.mxu0 0.0
        %627 = vmatprep.subr.mxu0 0.0
        %628 = vmatpush2.xpose.msra.mxu0 0.0
        %629 = vmatprep.subr.mxu0 0.0
        %630 = vmatpush2.xpose.msra.mxu0 0.0
        %631 = vmatprep.subr.mxu0 0.0
        %632 = vmatpush2.xpose.msra.mxu0 0.0
        %633 = vmatprep.subr.mxu0 0.0
        %634 = vmatpush2.xpose.msra.mxu0 0.0
        %635 = vmatprep.subr.mxu0 0.0
        %636 = vmatpush2.xpose.msra.mxu0 0.0
        %637 = vmatprep.subr.mxu0 0.0
        %638 = vmatpush2.xpose.msra.mxu0 0.0
        %639 = vmatprep.subr.mxu0 0.0
        %640 = vmatpush2.xpose.msra.mxu0 0.0
        %641 = vmatprep.subr.mxu0 0.0
        %642 = vmatpush2.xpose.msra.mxu0 0.0
        %643 = vmatprep.subr.mxu0 0.0
        %644 = vmatpush2.xpose.msra.mxu0 0.0
        %645 = vmatprep.mubr.f32.mxu0 0.0
        %646 = vmatmul.mubr.f32.gmra.mxu0 %v564
        %v647 = vpop.f32.mrf.mxu0
        %v648 = vadd.f32 %v561, %v647
        %v649 = vpop.f32.mrf.mxu0
        %650 = vmatprep.mubr.f32.mxu0 0.0
        %651 = vmatmul.mubr.f32.gmra.mxu0 %v567
        %v652 = vpop.f32.mrf.mxu0
        %v653 = vadd.f32 %v561, %v652
        %v654 = vpop.f32.mrf.mxu0
        %655 = vdwg.mxu0
        %v656 = vld [vmem:[%s9 + $0x10] sm:$0xff]
        %v657 = vld [vmem:[%s9 + $0x18] sm:$0xff]
        %v658 = vmul.f32 %v648, %v656
        %v659 = vmul.f32 %v653, %v657
        %662 = vrot.lane.b32.xlu0 %v658, 112
        %v663 = vpop.permute.xlu0 %662
        %664 = vrot.lane.b32.xlu0 %v659, 112
        %v665 = vpop.permute.xlu0 %664
        %v668 = vsub.f32 %v658, %v663
        %v669 = vsub.f32 %v659, %v665
        %672 = vrot.lane.b32.xlu0 %v656, 112
        %v673 = vpop.permute.xlu0 %672
        %674 = vrot.lane.b32.xlu0 %v657, 112
        %v675 = vpop.permute.xlu0 %674
        %v678 = vmul.f32 %v648, %v673
        %v679 = vmul.f32 %v653, %v675
        %680 = vrot.lane.b32.xlu0 %v656, 16
        %v681 = vpop.permute.xlu0 %680
        %682 = vrot.lane.b32.xlu0 %v657, 16
        %v683 = vpop.permute.xlu0 %682
        %v686 = vmul.f32 %v648, %v681
        %v687 = vmul.f32 %v653, %v683
        %690 = vrot.lane.b32.xlu0 %v686, 112
        %v691 = vpop.permute.xlu0 %690
        %692 = vrot.lane.b32.xlu0 %v687, 112
        %v693 = vpop.permute.xlu0 %692
        %v696 = vadd.f32 %v678, %v691
        %v697 = vadd.f32 %v679, %v693
        %700 = vrot.lane.b32.xlu0 %v696, 16
        %v701 = vpop.permute.xlu0 %700
        %702 = vrot.lane.b32.xlu0 %v697, 16
        %v703 = vpop.permute.xlu0 %702
        %v706 = vsel %vm456, %v668, %v701
        %v707 = vsel %vm456, %v669, %v703
        %v708 = vld [vmem:[%s7] sm:$0xff]
        %v709 = vld [vmem:[%s7 + $0x8] sm:$0xff]
        %v710 = vld [vmem:[%s7 + $0x10] sm:$0xff]
        %v711 = vld [vmem:[%s7 + $0x18] sm:$0xff]
        %v712 = vld [vmem:[%s9 + $0x2] sm:$0x1]
        %v713 = vlaneseq
        %v714 = vshrl.u32 %v713, 7
        %v715 = vsub.s32 0, %v714
        %v716 = vrot.slane %v712, %v715
        %vm717 = vcmask 261120
        %v719 = vsel %vm717, %v706, 0
        %v722 = vsel %vm717, %v707, 0
        %v725 = vsel %vm717, %v708, 0
        %v728 = vsel %vm717, %v709, 0
        %v731 = vsel %vm717, %v710, 0
        %v734 = vsel %vm717, %v711, 0
        %736 = vmatprep.subr.mxu0 0.0
        %737 = vmatpush1.xpose.msra.mxu0 0.0
        %738 = vmatprep.subr.mxu0 0.0
        %739 = vmatpush1.xpose.msra.mxu0 0.0
        %740 = vmatprep.subr.mxu0 0.0
        %741 = vmatpush1.xpose.msra.mxu0 0.0
        %742 = vmatprep.subr.mxu0 0.0
        %743 = vmatpush1.xpose.msra.mxu0 0.0
        %744 = vmatprep.subr.mxu0 0.0
        %745 = vmatpush1.xpose.msra.mxu0 0.0
        %746 = vmatprep.subr.mxu0 0.0
        %747 = vmatpush1.xpose.msra.mxu0 0.0
        %748 = vmatprep.subr.mxu0 0.0
        %749 = vmatpush1.xpose.msra.mxu0 0.0
        %750 = vmatprep.subr.mxu0 0.0
        %751 = vmatpush1.xpose.msra.mxu0 0.0
        %752 = vmatprep.subr.mxu0 0.0
        %753 = vmatpush1.xpose.msra.mxu0 0.0
        %754 = vmatprep.subr.mxu0 0.0
        %755 = vmatpush1.xpose.msra.mxu0 0.0
        %756 = vmatprep.subr.mxu0 0.0
        %757 = vmatpush1.xpose.msra.mxu0 0.0
        %758 = vmatprep.subr.mxu0 0.0
        %759 = vmatpush1.xpose.msra.mxu0 0.0
        %760 = vmatprep.subr.mxu0 0.0
        %761 = vmatpush1.xpose.msra.mxu0 %v734
        %762 = vmatprep.subr.mxu0 0.0
        %763 = vmatpush1.xpose.msra.mxu0 %v731
        %764 = vmatprep.subr.mxu0 0.0
        %765 = vmatpush1.xpose.msra.mxu0 %v728
        %766 = vmatprep.subr.mxu0 0.0
        %767 = vmatpush1.xpose.msra.mxu0 %v725
        %768 = vmatprep.subr.mxu0 0.0
        %769 = vmatpush2.xpose.msra.mxu0 0.0
        %770 = vmatprep.subr.mxu0 0.0
        %771 = vmatpush2.xpose.msra.mxu0 0.0
        %772 = vmatprep.subr.mxu0 0.0
        %773 = vmatpush2.xpose.msra.mxu0 0.0
        %774 = vmatprep.subr.mxu0 0.0
        %775 = vmatpush2.xpose.msra.mxu0 0.0
        %776 = vmatprep.subr.mxu0 0.0
        %777 = vmatpush2.xpose.msra.mxu0 0.0
        %778 = vmatprep.subr.mxu0 0.0
        %779 = vmatpush2.xpose.msra.mxu0 0.0
        %780 = vmatprep.subr.mxu0 0.0
        %781 = vmatpush2.xpose.msra.mxu0 0.0
        %782 = vmatprep.subr.mxu0 0.0
        %783 = vmatpush2.xpose.msra.mxu0 0.0
        %784 = vmatprep.subr.mxu0 0.0
        %785 = vmatpush2.xpose.msra.mxu0 0.0
        %786 = vmatprep.subr.mxu0 0.0
        %787 = vmatpush2.xpose.msra.mxu0 0.0
        %788 = vmatprep.subr.mxu0 0.0
        %789 = vmatpush2.xpose.msra.mxu0 0.0
        %790 = vmatprep.subr.mxu0 0.0
        %791 = vmatpush2.xpose.msra.mxu0 0.0
        %792 = vmatprep.subr.mxu0 0.0
        %793 = vmatpush2.xpose.msra.mxu0 0.0
        %794 = vmatprep.subr.mxu0 0.0
        %795 = vmatpush2.xpose.msra.mxu0 0.0
        %796 = vmatprep.subr.mxu0 0.0
        %797 = vmatpush2.xpose.msra.mxu0 0.0
        %798 = vmatprep.subr.mxu0 0.0
        %799 = vmatpush2.xpose.msra.mxu0 0.0
        %800 = vmatprep.mubr.f32.mxu0 0.0
        %801 = vmatmul.mubr.f32.gmra.mxu0 %v719
        %v802 = vpop.f32.mrf.mxu0
        %v803 = vadd.f32 %v716, %v802
        %v804 = vpop.f32.mrf.mxu0
        %805 = vmatprep.mubr.f32.mxu0 0.0
        %806 = vmatmul.mubr.f32.gmra.mxu0 %v722
        %v807 = vpop.f32.mrf.mxu0
        %v808 = vadd.f32 %v716, %v807
        %v809 = vpop.f32.mrf.mxu0
        %810 = vdwg.mxu0
        %v811 = vld [vmem:[%s7 + $0x20] sm:$0xff]
        %v812 = vld [vmem:[%s7 + $0x28] sm:$0xff]
        %v813 = vld [vmem:[%s7 + $0x30] sm:$0xff]
        %v814 = vld [vmem:[%s7 + $0x38] sm:$0xff]
        %v815 = vld [vmem:[%s7 + $0x40] sm:$0xff]
        %v816 = vld [vmem:[%s7 + $0x48] sm:$0xff]
        %v817 = vld [vmem:[%s7 + $0x50] sm:$0xff]
        %v818 = vld [vmem:[%s7 + $0x58] sm:$0xff]
        %v819 = vld [vmem:[%s9 + $0x3] sm:$0x1]
        %v820 = vlaneseq
        %v821 = vshrl.u32 %v820, 7
        %v822 = vsub.s32 0, %v821
        %v823 = vrot.slane %v819, %v822
        %v825 = vsel %vm717, %v451, 0
        %v828 = vsel %vm717, %v811, 0
        %v831 = vsel %vm717, %v812, 0
        %v834 = vsel %vm717, %v813, 0
        %v837 = vsel %vm717, %v814, 0
        %v840 = vsel %vm717, %v815, 0
        %v843 = vsel %vm717, %v816, 0
        %v846 = vsel %vm717, %v817, 0
        %v849 = vsel %vm717, %v818, 0
        %851 = vmatprep.subr.mxu0 0.0
        %852 = vmatpush1.xpose.msra.mxu0 0.0
        %853 = vmatprep.subr.mxu0 0.0
        %854 = vmatpush1.xpose.msra.mxu0 0.0
        %855 = vmatprep.subr.mxu0 0.0
        %856 = vmatpush1.xpose.msra.mxu0 0.0
        %857 = vmatprep.subr.mxu0 0.0
        %858 = vmatpush1.xpose.msra.mxu0 0.0
        %859 = vmatprep.subr.mxu0 0.0
        %860 = vmatpush1.xpose.msra.mxu0 0.0
        %861 = vmatprep.subr.mxu0 0.0
        %862 = vmatpush1.xpose.msra.mxu0 0.0
        %863 = vmatprep.subr.mxu0 0.0
        %864 = vmatpush1.xpose.msra.mxu0 0.0
        %865 = vmatprep.subr.mxu0 0.0
        %866 = vmatpush1.xpose.msra.mxu0 0.0
        %867 = vmatprep.subr.mxu0 0.0
        %868 = vmatpush1.xpose.msra.mxu0 %v849
        %869 = vmatprep.subr.mxu0 0.0
        %870 = vmatpush1.xpose.msra.mxu0 %v846
        %871 = vmatprep.subr.mxu0 0.0
        %872 = vmatpush1.xpose.msra.mxu0 %v843
        %873 = vmatprep.subr.mxu0 0.0
        %874 = vmatpush1.xpose.msra.mxu0 %v840
        %875 = vmatprep.subr.mxu0 0.0
        %876 = vmatpush1.xpose.msra.mxu0 %v837
        %877 = vmatprep.subr.mxu0 0.0
        %878 = vmatpush1.xpose.msra.mxu0 %v834
        %879 = vmatprep.subr.mxu0 0.0
        %880 = vmatpush1.xpose.msra.mxu0 %v831
        %881 = vmatprep.subr.mxu0 0.0
        %882 = vmatpush1.xpose.msra.mxu0 %v828
        %883 = vmatprep.subr.mxu0 0.0
        %884 = vmatpush2.xpose.msra.mxu0 0.0
        %885 = vmatprep.subr.mxu0 0.0
        %886 = vmatpush2.xpose.msra.mxu0 0.0
        %887 = vmatprep.subr.mxu0 0.0
        %888 = vmatpush2.xpose.msra.mxu0 0.0
        %889 = vmatprep.subr.mxu0 0.0
        %890 = vmatpush2.xpose.msra.mxu0 0.0
        %891 = vmatprep.subr.mxu0 0.0
        %892 = vmatpush2.xpose.msra.mxu0 0.0
        %893 = vmatprep.subr.mxu0 0.0
        %894 = vmatpush2.xpose.msra.mxu0 0.0
        %895 = vmatprep.subr.mxu0 0.0
        %896 = vmatpush2.xpose.msra.mxu0 0.0
        %897 = vmatprep.subr.mxu0 0.0
        %898 = vmatpush2.xpose.msra.mxu0 0.0
        %899 = vmatprep.subr.mxu0 0.0
        %900 = vmatpush2.xpose.msra.mxu0 0.0
        %901 = vmatprep.subr.mxu0 0.0
        %902 = vmatpush2.xpose.msra.mxu0 0.0
        %903 = vmatprep.subr.mxu0 0.0
        %904 = vmatpush2.xpose.msra.mxu0 0.0
        %905 = vmatprep.subr.mxu0 0.0
        %906 = vmatpush2.xpose.msra.mxu0 0.0
        %907 = vmatprep.subr.mxu0 0.0
        %908 = vmatpush2.xpose.msra.mxu0 0.0
        %909 = vmatprep.subr.mxu0 0.0
        %910 = vmatpush2.xpose.msra.mxu0 0.0
        %911 = vmatprep.subr.mxu0 0.0
        %912 = vmatpush2.xpose.msra.mxu0 0.0
        %913 = vmatprep.subr.mxu0 0.0
        %914 = vmatpush2.xpose.msra.mxu0 0.0
        %915 = vmatprep.mubr.f32.mxu0 0.0
        %916 = vmatmul.mubr.f32.gmra.mxu0 %v825
        %v917 = vpop.f32.mrf.mxu0
        %v918 = vadd.f32 %v823, %v917
        %v919 = vpop.f32.mrf.mxu0
        %920 = vdwg.mxu0
        %v922 = vsel %vm562, %v803, 0
        %v925 = vsel %vm562, %v808, 0
        %v928 = vsel %vm562, %v918, 0
        %930 = vmatprep.subr.mxu0 0.0
        %931 = vmatpush1.xpose.msra.mxu0 0.0
        %932 = vmatprep.subr.mxu0 0.0
        %933 = vmatpush1.xpose.msra.mxu0 0.0
        %934 = vmatprep.subr.mxu0 0.0
        %935 = vmatpush1.xpose.msra.mxu0 0.0
        %936 = vmatprep.subr.mxu0 0.0
        %937 = vmatpush1.xpose.msra.mxu0 0.0
        %938 = vmatprep.subr.mxu0 0.0
        %939 = vmatpush1.xpose.msra.mxu0 0.0
        %940 = vmatprep.subr.mxu0 0.0
        %941 = vmatpush1.xpose.msra.mxu0 0.0
        %942 = vmatprep.subr.mxu0 0.0
        %943 = vmatpush1.xpose.msra.mxu0 0.0
        %944 = vmatprep.subr.mxu0 0.0
        %945 = vmatpush1.xpose.msra.mxu0 0.0
        %946 = vmatprep.subr.mxu0 0.0
        %947 = vmatpush1.xpose.msra.mxu0 0.0
        %948 = vmatprep.subr.mxu0 0.0
        %949 = vmatpush1.xpose.msra.mxu0 0.0
        %950 = vmatprep.subr.mxu0 0.0
        %951 = vmatpush1.xpose.msra.mxu0 0.0
        %952 = vmatprep.subr.mxu0 0.0
        %953 = vmatpush1.xpose.msra.mxu0 0.0
        %954 = vmatprep.subr.mxu0 0.0
        %955 = vmatpush1.xpose.msra.mxu0 0.0
        %956 = vmatprep.subr.mxu0 0.0
        %957 = vmatpush1.xpose.msra.mxu0 0.0
        %958 = vmatprep.subr.mxu0 0.0
        %959 = vmatpush1.xpose.msra.mxu0 0.0
        %960 = vmatprep.subr.mxu0 0.0
        %961 = vmatpush1.xpose.msra.mxu0 %v928
        %962 = vmatprep.subr.mxu0 0.0
        %963 = vmatpush2.xpose.msra.mxu0 0.0
        %964 = vmatprep.subr.mxu0 0.0
        %965 = vmatpush2.xpose.msra.mxu0 0.0
        %966 = vmatprep.subr.mxu0 0.0
        %967 = vmatpush2.xpose.msra.mxu0 0.0
        %968 = vmatprep.subr.mxu0 0.0
        %969 = vmatpush2.xpose.msra.mxu0 0.0
        %970 = vmatprep.subr.mxu0 0.0
        %971 = vmatpush2.xpose.msra.mxu0 0.0
        %972 = vmatprep.subr.mxu0 0.0
        %973 = vmatpush2.xpose.msra.mxu0 0.0
        %974 = vmatprep.subr.mxu0 0.0
        %975 = vmatpush2.xpose.msra.mxu0 0.0
        %976 = vmatprep.subr.mxu0 0.0
        %977 = vmatpush2.xpose.msra.mxu0 0.0
        %978 = vmatprep.subr.mxu0 0.0
        %979 = vmatpush2.xpose.msra.mxu0 0.0
        %980 = vmatprep.subr.mxu0 0.0
        %981 = vmatpush2.xpose.msra.mxu0 0.0
        %982 = vmatprep.subr.mxu0 0.0
        %983 = vmatpush2.xpose.msra.mxu0 0.0
        %984 = vmatprep.subr.mxu0 0.0
        %985 = vmatpush2.xpose.msra.mxu0 0.0
        %986 = vmatprep.subr.mxu0 0.0
        %987 = vmatpush2.xpose.msra.mxu0 0.0
        %988 = vmatprep.subr.mxu0 0.0
        %989 = vmatpush2.xpose.msra.mxu0 0.0
        %990 = vmatprep.subr.mxu0 0.0
        %991 = vmatpush2.xpose.msra.mxu0 0.0
        %992 = vmatprep.subr.mxu0 0.0
        %993 = vmatpush2.xpose.msra.mxu0 0.0
        %994 = vmatprep.mubr.f32.mxu0 0.0
        %995 = vmatmul.mubr.f32.gmra.mxu0 %v922
        %v996 = vpop.f32.mrf.mxu0
        %v997 = vadd.f32 0.0, %v996
        %v998 = vpop.f32.mrf.mxu0
        %999 = vmatprep.mubr.f32.mxu0 0.0
        %1000 = vmatmul.mubr.f32.gmra.mxu0 %v925
        %v1001 = vpop.f32.mrf.mxu0
        %v1002 = vadd.f32 0.0, %v1001
        %v1003 = vpop.f32.mrf.mxu0
        %1004 = vdwg.mxu0
        %v1005 = vmul.f32 %v997, 0.35355338
        %v1006 = vmul.f32 %v1002, 0.35355338
        %v1008 = vlaneseq
        %v1009 = vshrl.u32 %v1008, 7
        %v1010 = vsub.s32 0, %v1009
        %v1011 = vrot.slane %v452, %v1010
        %v1013 = vadd.f32 %v1005, %v1011
        %v1014 = vadd.f32 %v1006, %v1011
        %v1015 = vsel %vm562, %v1013, -inf
        %1016 = vmax.xlane.f32.xlu0 %v1015
        %v1017 = vpop.xlane.xlu0 %1016
        %v1018 = vsel %vm562, %v1014, -inf
        %1019 = vmax.xlane.f32.xlu0 %v1018
        %v1020 = vpop.xlane.xlu0 %1019
        %v1021 = vsub.f32 %v1013, %v1017
        %v1022 = vsub.f32 %v1014, %v1020
        %v1023 = vmul.f32 %v1021, 1.442695
        %v1024 = vpow.pop %v1023
        %v1025 = vmul.f32 %v1022, 1.442695
        %v1026 = vpow.pop %v1025
        %v1027 = vsel %vm562, %v1024, 0.0
        %1028 = vadd.xlane.f32.xlu0 %v1027
        %v1029 = vpop.xlane.xlu0 %1028
        %v1030 = vsel %vm562, %v1026, 0.0
        %1031 = vadd.xlane.f32.xlu0 %v1030
        %v1032 = vpop.xlane.xlu0 %1031
        %v1033 = vrcp.pop %v1029
        %v1034 = vmul.f32 %v1024, %v1033
        %v1035 = vrcp.pop %v1032
        %v1036 = vmul.f32 %v1026, %v1035
        %1037 = vrot.lane.b32.xlu0 %v918, 96
        %v1038 = vpop.permute.xlu0 %1037
        %v1041 = vsel %vm562, %v1034, 0
        %v1044 = vsel %vm562, %v1036, 0
        %1046 = vmatprep.subr.mxu0 0.0
        %1047 = vmatpush1.msra.mxu0 0.0
        %1048 = vmatprep.subr.mxu0 0.0
        %1049 = vmatpush1.msra.mxu0 0.0
        %1050 = vmatprep.subr.mxu0 0.0
        %1051 = vmatpush1.msra.mxu0 0.0
        %1052 = vmatprep.subr.mxu0 0.0
        %1053 = vmatpush1.msra.mxu0 0.0
        %1054 = vmatprep.subr.mxu0 0.0
        %1055 = vmatpush1.msra.mxu0 0.0
        %1056 = vmatprep.subr.mxu0 0.0
        %1057 = vmatpush1.msra.mxu0 0.0
        %1058 = vmatprep.subr.mxu0 0.0
        %1059 = vmatpush1.msra.mxu0 0.0
        %1060 = vmatprep.subr.mxu0 0.0
        %1061 = vmatpush1.msra.mxu0 0.0
        %1062 = vmatprep.subr.mxu0 0.0
        %1063 = vmatpush1.msra.mxu0 0.0
        %1064 = vmatprep.subr.mxu0 0.0
        %1065 = vmatpush1.msra.mxu0 0.0
        %1066 = vmatprep.subr.mxu0 0.0
        %1067 = vmatpush1.msra.mxu0 0.0
        %1068 = vmatprep.subr.mxu0 0.0
        %1069 = vmatpush1.msra.mxu0 0.0
        %1070 = vmatprep.subr.mxu0 0.0
        %1071 = vmatpush1.msra.mxu0 0.0
        %1072 = vmatprep.subr.mxu0 0.0
        %1073 = vmatpush1.msra.mxu0 0.0
        %1074 = vmatprep.subr.mxu0 0.0
        %1075 = vmatpush1.msra.mxu0 0.0
        %1076 = vmatprep.subr.mxu0 0.0
        %1077 = vmatpush1.msra.mxu0 %v1038
        %1078 = vmatprep.subr.mxu0 0.0
        %1079 = vmatpush2.msra.mxu0 0.0
        %1080 = vmatprep.subr.mxu0 0.0
        %1081 = vmatpush2.msra.mxu0 0.0
        %1082 = vmatprep.subr.mxu0 0.0
        %1083 = vmatpush2.msra.mxu0 0.0
        %1084 = vmatprep.subr.mxu0 0.0
        %1085 = vmatpush2.msra.mxu0 0.0
        %1086 = vmatprep.subr.mxu0 0.0
        %1087 = vmatpush2.msra.mxu0 0.0
        %1088 = vmatprep.subr.mxu0 0.0
        %1089 = vmatpush2.msra.mxu0 0.0
        %1090 = vmatprep.subr.mxu0 0.0
        %1091 = vmatpush2.msra.mxu0 0.0
        %1092 = vmatprep.subr.mxu0 0.0
        %1093 = vmatpush2.msra.mxu0 0.0
        %1094 = vmatprep.subr.mxu0 0.0
        %1095 = vmatpush2.msra.mxu0 0.0
        %1096 = vmatprep.subr.mxu0 0.0
        %1097 = vmatpush2.msra.mxu0 0.0
        %1098 = vmatprep.subr.mxu0 0.0
        %1099 = vmatpush2.msra.mxu0 0.0
        %1100 = vmatprep.subr.mxu0 0.0
        %1101 = vmatpush2.msra.mxu0 0.0
        %1102 = vmatprep.subr.mxu0 0.0
        %1103 = vmatpush2.msra.mxu0 0.0
        %1104 = vmatprep.subr.mxu0 0.0
        %1105 = vmatpush2.msra.mxu0 0.0
        %1106 = vmatprep.subr.mxu0 0.0
        %1107 = vmatpush2.msra.mxu0 0.0
        %1108 = vmatprep.subr.mxu0 0.0
        %1109 = vmatpush2.msra.mxu0 0.0
        %1110 = vmatprep.mubr.f32.mxu0 0.0
        %1111 = vmatmul.mubr.f32.gmra.mxu0 %v1041
        %v1112 = vpop.f32.mrf.mxu0
        %v1113 = vadd.f32 0.0, %v1112
        %v1114 = vpop.f32.mrf.mxu0
        %1115 = vmatprep.mubr.f32.mxu0 0.0
        %1116 = vmatmul.mubr.f32.gmra.mxu0 %v1044
        %v1117 = vpop.f32.mrf.mxu0
        %v1118 = vadd.f32 0.0, %v1117
        %v1119 = vpop.f32.mrf.mxu0
        %1120 = vdwg.mxu0
        %1121 = vrot.lane.b32.xlu0 %v803, 120
        %v1122 = vpop.permute.xlu0 %1121
        %1123 = vrot.lane.b32.xlu0 %v808, 120
        %v1124 = vpop.permute.xlu0 %1123
        %1125 = vrot.lane.b32.xlu0 %v918, 120
        %v1126 = vpop.permute.xlu0 %1125
        %v1127 = vsel %vm562, %v1122, 0
        %v1129 = vsel %vm562, %v1124, 0
        %v1131 = vsel %vm562, %v1126, 0
        %1133 = vmatprep.subr.mxu0 0.0
        %1134 = vmatpush1.xpose.msra.mxu0 0.0
        %1135 = vmatprep.subr.mxu0 0.0
        %1136 = vmatpush1.xpose.msra.mxu0 0.0
        %1137 = vmatprep.subr.mxu0 0.0
        %1138 = vmatpush1.xpose.msra.mxu0 0.0
        %1139 = vmatprep.subr.mxu0 0.0
        %1140 = vmatpush1.xpose.msra.mxu0 0.0
        %1141 = vmatprep.subr.mxu0 0.0
        %1142 = vmatpush1.xpose.msra.mxu0 0.0
        %1143 = vmatprep.subr.mxu0 0.0
        %1144 = vmatpush1.xpose.msra.mxu0 0.0
        %1145 = vmatprep.subr.mxu0 0.0
        %1146 = vmatpush1.xpose.msra.mxu0 0.0
        %1147 = vmatprep.subr.mxu0 0.0
        %1148 = vmatpush1.xpose.msra.mxu0 0.0
        %1149 = vmatprep.subr.mxu0 0.0
        %1150 = vmatpush1.xpose.msra.mxu0 0.0
        %1151 = vmatprep.subr.mxu0 0.0
        %1152 = vmatpush1.xpose.msra.mxu0 0.0
        %1153 = vmatprep.subr.mxu0 0.0
        %1154 = vmatpush1.xpose.msra.mxu0 0.0
        %1155 = vmatprep.subr.mxu0 0.0
        %1156 = vmatpush1.xpose.msra.mxu0 0.0
        %1157 = vmatprep.subr.mxu0 0.0
        %1158 = vmatpush1.xpose.msra.mxu0 0.0
        %1159 = vmatprep.subr.mxu0 0.0
        %1160 = vmatpush1.xpose.msra.mxu0 0.0
        %1161 = vmatprep.subr.mxu0 0.0
        %1162 = vmatpush1.xpose.msra.mxu0 0.0
        %1163 = vmatprep.subr.mxu0 0.0
        %1164 = vmatpush1.xpose.msra.mxu0 %v1131
        %1165 = vmatprep.subr.mxu0 0.0
        %1166 = vmatpush2.xpose.msra.mxu0 0.0
        %1167 = vmatprep.subr.mxu0 0.0
        %1168 = vmatpush2.xpose.msra.mxu0 0.0
        %1169 = vmatprep.subr.mxu0 0.0
        %1170 = vmatpush2.xpose.msra.mxu0 0.0
        %1171 = vmatprep.subr.mxu0 0.0
        %1172 = vmatpush2.xpose.msra.mxu0 0.0
        %1173 = vmatprep.subr.mxu0 0.0
        %1174 = vmatpush2.xpose.msra.mxu0 0.0
        %1175 = vmatprep.subr.mxu0 0.0
        %1176 = vmatpush2.xpose.msra.mxu0 0.0
        %1177 = vmatprep.subr.mxu0 0.0
        %1178 = vmatpush2.xpose.msra.mxu0 0.0
        %1179 = vmatprep.subr.mxu0 0.0
        %1180 = vmatpush2.xpose.msra.mxu0 0.0
        %1181 = vmatprep.subr.mxu0 0.0
        %1182 = vmatpush2.xpose.msra.mxu0 0.0
        %1183 = vmatprep.subr.mxu0 0.0
        %1184 = vmatpush2.xpose.msra.mxu0 0.0
        %1185 = vmatprep.subr.mxu0 0.0
        %1186 = vmatpush2.xpose.msra.mxu0 0.0
        %1187 = vmatprep.subr.mxu0 0.0
        %1188 = vmatpush2.xpose.msra.mxu0 0.0
        %1189 = vmatprep.subr.mxu0 0.0
        %1190 = vmatpush2.xpose.msra.mxu0 0.0
        %1191 = vmatprep.subr.mxu0 0.0
        %1192 = vmatpush2.xpose.msra.mxu0 0.0
        %1193 = vmatprep.subr.mxu0 0.0
        %1194 = vmatpush2.xpose.msra.mxu0 0.0
        %1195 = vmatprep.subr.mxu0 0.0
        %1196 = vmatpush2.xpose.msra.mxu0 0.0
        %1197 = vmatprep.mubr.f32.mxu0 0.0
        %1198 = vmatmul.mubr.f32.gmra.mxu0 %v1127
        %v1199 = vpop.f32.mrf.mxu0
        %v1200 = vadd.f32 0.0, %v1199
        %v1201 = vpop.f32.mrf.mxu0
        %1202 = vmatprep.mubr.f32.mxu0 0.0
        %1203 = vmatmul.mubr.f32.gmra.mxu0 %v1129
        %v1204 = vpop.f32.mrf.mxu0
        %v1205 = vadd.f32 0.0, %v1204
        %v1206 = vpop.f32.mrf.mxu0
        %1207 = vdwg.mxu0
        %v1208 = vmul.f32 %v1200, 0.35355338
        %v1209 = vmul.f32 %v1205, 0.35355338
        %v1210 = vadd.f32 %v1208, %v1011
        %v1211 = vadd.f32 %v1209, %v1011
        %v1212 = vsel %vm562, %v1210, -inf
        %1213 = vmax.xlane.f32.xlu0 %v1212
        %v1214 = vpop.xlane.xlu0 %1213
        %v1215 = vsel %vm562, %v1211, -inf
        %1216 = vmax.xlane.f32.xlu0 %v1215
        %v1217 = vpop.xlane.xlu0 %1216
        %v1218 = vsub.f32 %v1210, %v1214
        %v1219 = vsub.f32 %v1211, %v1217
        %v1220 = vmul.f32 %v1218, 1.442695
        %v1221 = vpow.pop %v1220
        %v1222 = vmul.f32 %v1219, 1.442695
        %v1223 = vpow.pop %v1222
        %v1224 = vsel %vm562, %v1221, 0.0
        %1225 = vadd.xlane.f32.xlu0 %v1224
        %v1226 = vpop.xlane.xlu0 %1225
        %v1227 = vsel %vm562, %v1223, 0.0
        %1228 = vadd.xlane.f32.xlu0 %v1227
        %v1229 = vpop.xlane.xlu0 %1228
        %v1230 = vrcp.pop %v1226
        %v1231 = vmul.f32 %v1221, %v1230
        %v1232 = vrcp.pop %v1229
        %v1233 = vmul.f32 %v1223, %v1232
        %1234 = vrot.lane.b32.xlu0 %v918, 88
        %v1235 = vpop.permute.xlu0 %1234
        %v1238 = vsel %vm562, %v1231, 0
        %v1241 = vsel %vm562, %v1233, 0
        %1243 = vmatprep.subr.mxu0 0.0
        %1244 = vmatpush1.msra.mxu0 0.0
        %1245 = vmatprep.subr.mxu0 0.0
        %1246 = vmatpush1.msra.mxu0 0.0
        %1247 = vmatprep.subr.mxu0 0.0
        %1248 = vmatpush1.msra.mxu0 0.0
        %1249 = vmatprep.subr.mxu0 0.0
        %1250 = vmatpush1.msra.mxu0 0.0
        %1251 = vmatprep.subr.mxu0 0.0
        %1252 = vmatpush1.msra.mxu0 0.0
        %1253 = vmatprep.subr.mxu0 0.0
        %1254 = vmatpush1.msra.mxu0 0.0
        %1255 = vmatprep.subr.mxu0 0.0
        %1256 = vmatpush1.msra.mxu0 0.0
        %1257 = vmatprep.subr.mxu0 0.0
        %1258 = vmatpush1.msra.mxu0 0.0
        %1259 = vmatprep.subr.mxu0 0.0
        %1260 = vmatpush1.msra.mxu0 0.0
        %1261 = vmatprep.subr.mxu0 0.0
        %1262 = vmatpush1.msra.mxu0 0.0
        %1263 = vmatprep.subr.mxu0 0.0
        %1264 = vmatpush1.msra.mxu0 0.0
        %1265 = vmatprep.subr.mxu0 0.0
        %1266 = vmatpush1.msra.mxu0 0.0
        %1267 = vmatprep.subr.mxu0 0.0
        %1268 = vmatpush1.msra.mxu0 0.0
        %1269 = vmatprep.subr.mxu0 0.0
        %1270 = vmatpush1.msra.mxu0 0.0
        %1271 = vmatprep.subr.mxu0 0.0
        %1272 = vmatpush1.msra.mxu0 0.0
        %1273 = vmatprep.subr.mxu0 0.0
        %1274 = vmatpush1.msra.mxu0 %v1235
        %1275 = vmatprep.subr.mxu0 0.0
        %1276 = vmatpush2.msra.mxu0 0.0
        %1277 = vmatprep.subr.mxu0 0.0
        %1278 = vmatpush2.msra.mxu0 0.0
        %1279 = vmatprep.subr.mxu0 0.0
        %1280 = vmatpush2.msra.mxu0 0.0
        %1281 = vmatprep.subr.mxu0 0.0
        %1282 = vmatpush2.msra.mxu0 0.0
        %1283 = vmatprep.subr.mxu0 0.0
        %1284 = vmatpush2.msra.mxu0 0.0
        %1285 = vmatprep.subr.mxu0 0.0
        %1286 = vmatpush2.msra.mxu0 0.0
        %1287 = vmatprep.subr.mxu0 0.0
        %1288 = vmatpush2.msra.mxu0 0.0
        %1289 = vmatprep.subr.mxu0 0.0
        %1290 = vmatpush2.msra.mxu0 0.0
        %1291 = vmatprep.subr.mxu0 0.0
        %1292 = vmatpush2.msra.mxu0 0.0
        %1293 = vmatprep.subr.mxu0 0.0
        %1294 = vmatpush2.msra.mxu0 0.0
        %1295 = vmatprep.subr.mxu0 0.0
        %1296 = vmatpush2.msra.mxu0 0.0
        %1297 = vmatprep.subr.mxu0 0.0
        %1298 = vmatpush2.msra.mxu0 0.0
        %1299 = vmatprep.subr.mxu0 0.0
        %1300 = vmatpush2.msra.mxu0 0.0
        %1301 = vmatprep.subr.mxu0 0.0
        %1302 = vmatpush2.msra.mxu0 0.0
        %1303 = vmatprep.subr.mxu0 0.0
        %1304 = vmatpush2.msra.mxu0 0.0
        %1305 = vmatprep.subr.mxu0 0.0
        %1306 = vmatpush2.msra.mxu0 0.0
        %1307 = vmatprep.mubr.f32.mxu0 0.0
        %1308 = vmatmul.mubr.f32.gmra.mxu0 %v1238
        %v1309 = vpop.f32.mrf.mxu0
        %v1310 = vadd.f32 0.0, %v1309
        %v1311 = vpop.f32.mrf.mxu0
        %1312 = vmatprep.mubr.f32.mxu0 0.0
        %1313 = vmatmul.mubr.f32.gmra.mxu0 %v1241
        %v1314 = vpop.f32.mrf.mxu0
        %v1315 = vadd.f32 0.0, %v1314
        %v1316 = vpop.f32.mrf.mxu0
        %1317 = vdwg.mxu0
        %1318 = vrot.lane.b32.xlu0 %v803, 112
        %v1319 = vpop.permute.xlu0 %1318
        %1320 = vrot.lane.b32.xlu0 %v808, 112
        %v1321 = vpop.permute.xlu0 %1320
        %1322 = vrot.lane.b32.xlu0 %v918, 112
        %v1323 = vpop.permute.xlu0 %1322
        %v1324 = vsel %vm562, %v1319, 0
        %v1326 = vsel %vm562, %v1321, 0
        %v1328 = vsel %vm562, %v1323, 0
        %1330 = vmatprep.subr.mxu0 0.0
        %1331 = vmatpush1.xpose.msra.mxu0 0.0
        %1332 = vmatprep.subr.mxu0 0.0
        %1333 = vmatpush1.xpose.msra.mxu0 0.0
        %1334 = vmatprep.subr.mxu0 0.0
        %1335 = vmatpush1.xpose.msra.mxu0 0.0
        %1336 = vmatprep.subr.mxu0 0.0
        %1337 = vmatpush1.xpose.msra.mxu0 0.0
        %1338 = vmatprep.subr.mxu0 0.0
        %1339 = vmatpush1.xpose.msra.mxu0 0.0
        %1340 = vmatprep.subr.mxu0 0.0
        %1341 = vmatpush1.xpose.msra.mxu0 0.0
        %1342 = vmatprep.subr.mxu0 0.0
        %1343 = vmatpush1.xpose.msra.mxu0 0.0
        %1344 = vmatprep.subr.mxu0 0.0
        %1345 = vmatpush1.xpose.msra.mxu0 0.0
        %1346 = vmatprep.subr.mxu0 0.0
        %1347 = vmatpush1.xpose.msra.mxu0 0.0
        %1348 = vmatprep.subr.mxu0 0.0
        %1349 = vmatpush1.xpose.msra.mxu0 0.0
        %1350 = vmatprep.subr.mxu0 0.0
        %1351 = vmatpush1.xpose.msra.mxu0 0.0
        %1352 = vmatprep.subr.mxu0 0.0
        %1353 = vmatpush1.xpose.msra.mxu0 0.0
        %1354 = vmatprep.subr.mxu0 0.0
        %1355 = vmatpush1.xpose.msra.mxu0 0.0
        %1356 = vmatprep.subr.mxu0 0.0
        %1357 = vmatpush1.xpose.msra.mxu0 0.0
        %1358 = vmatprep.subr.mxu0 0.0
        %1359 = vmatpush1.xpose.msra.mxu0 0.0
        %1360 = vmatprep.subr.mxu0 0.0
        %1361 = vmatpush1.xpose.msra.mxu0 %v1328
        %1362 = vmatprep.subr.mxu0 0.0
        %1363 = vmatpush2.xpose.msra.mxu0 0.0
        %1364 = vmatprep.subr.mxu0 0.0
        %1365 = vmatpush2.xpose.msra.mxu0 0.0
        %1366 = vmatprep.subr.mxu0 0.0
        %1367 = vmatpush2.xpose.msra.mxu0 0.0
        %1368 = vmatprep.subr.mxu0 0.0
        %1369 = vmatpush2.xpose.msra.mxu0 0.0
        %1370 = vmatprep.subr.mxu0 0.0
        %1371 = vmatpush2.xpose.msra.mxu0 0.0
        %1372 = vmatprep.subr.mxu0 0.0
        %1373 = vmatpush2.xpose.msra.mxu0 0.0
        %1374 = vmatprep.subr.mxu0 0.0
        %1375 = vmatpush2.xpose.msra.mxu0 0.0
        %1376 = vmatprep.subr.mxu0 0.0
        %1377 = vmatpush2.xpose.msra.mxu0 0.0
        %1378 = vmatprep.subr.mxu0 0.0
        %1379 = vmatpush2.xpose.msra.mxu0 0.0
        %1380 = vmatprep.subr.mxu0 0.0
        %1381 = vmatpush2.xpose.msra.mxu0 0.0
        %1382 = vmatprep.subr.mxu0 0.0
        %1383 = vmatpush2.xpose.msra.mxu0 0.0
        %1384 = vmatprep.subr.mxu0 0.0
        %1385 = vmatpush2.xpose.msra.mxu0 0.0
        %1386 = vmatprep.subr.mxu0 0.0
        %1387 = vmatpush2.xpose.msra.mxu0 0.0
        %1388 = vmatprep.subr.mxu0 0.0
        %1389 = vmatpush2.xpose.msra.mxu0 0.0
        %1390 = vmatprep.subr.mxu0 0.0
        %1391 = vmatpush2.xpose.msra.mxu0 0.0
        %1392 = vmatprep.subr.mxu0 0.0
        %1393 = vmatpush2.xpose.msra.mxu0 0.0
        %1394 = vmatprep.mubr.f32.mxu0 0.0
        %1395 = vmatmul.mubr.f32.gmra.mxu0 %v1324
        %v1396 = vpop.f32.mrf.mxu0
        %v1397 = vadd.f32 0.0, %v1396
        %v1398 = vpop.f32.mrf.mxu0
        %1399 = vmatprep.mubr.f32.mxu0 0.0
        %1400 = vmatmul.mubr.f32.gmra.mxu0 %v1326
        %v1401 = vpop.f32.mrf.mxu0
        %v1402 = vadd.f32 0.0, %v1401
        %v1403 = vpop.f32.mrf.mxu0
        %1404 = vdwg.mxu0
        %v1405 = vmul.f32 %v1397, 0.35355338
        %v1406 = vmul.f32 %v1402, 0.35355338
        %v1407 = vadd.f32 %v1405, %v1011
        %v1408 = vadd.f32 %v1406, %v1011
        %v1409 = vsel %vm562, %v1407, -inf
        %1410 = vmax.xlane.f32.xlu0 %v1409
        %v1411 = vpop.xlane.xlu0 %1410
        %v1412 = vsel %vm562, %v1408, -inf
        %1413 = vmax.xlane.f32.xlu0 %v1412
        %v1414 = vpop.xlane.xlu0 %1413
        %v1415 = vsub.f32 %v1407, %v1411
        %v1416 = vsub.f32 %v1408, %v1414
        %v1417 = vmul.f32 %v1415, 1.442695
        %v1418 = vpow.pop %v1417
        %v1419 = vmul.f32 %v1416, 1.442695
        %v1420 = vpow.pop %v1419
        %v1421 = vsel %vm562, %v1418, 0.0
        %1422 = vadd.xlane.f32.xlu0 %v1421
        %v1423 = vpop.xlane.xlu0 %1422
        %v1424 = vsel %vm562, %v1420, 0.0
        %1425 = vadd.xlane.f32.xlu0 %v1424
        %v1426 = vpop.xlane.xlu0 %1425
        %v1427 = vrcp.pop %v1423
        %v1428 = vmul.f32 %v1418, %v1427
        %v1429 = vrcp.pop %v1426
        %v1430 = vmul.f32 %v1420, %v1429
        %1431 = vrot.lane.b32.xlu0 %v918, 80
        %v1432 = vpop.permute.xlu0 %1431
        %v1435 = vsel %vm562, %v1428, 0
        %v1438 = vsel %vm562, %v1430, 0
        %1440 = vmatprep.subr.mxu0 0.0
        %1441 = vmatpush1.msra.mxu0 0.0
        %1442 = vmatprep.subr.mxu0 0.0
        %1443 = vmatpush1.msra.mxu0 0.0
        %1444 = vmatprep.subr.mxu0 0.0
        %1445 = vmatpush1.msra.mxu0 0.0
        %1446 = vmatprep.subr.mxu0 0.0
        %1447 = vmatpush1.msra.mxu0 0.0
        %1448 = vmatprep.subr.mxu0 0.0
        %1449 = vmatpush1.msra.mxu0 0.0
        %1450 = vmatprep.subr.mxu0 0.0
        %1451 = vmatpush1.msra.mxu0 0.0
        %1452 = vmatprep.subr.mxu0 0.0
        %1453 = vmatpush1.msra.mxu0 0.0
        %1454 = vmatprep.subr.mxu0 0.0
        %1455 = vmatpush1.msra.mxu0 0.0
        %1456 = vmatprep.subr.mxu0 0.0
        %1457 = vmatpush1.msra.mxu0 0.0
        %1458 = vmatprep.subr.mxu0 0.0
        %1459 = vmatpush1.msra.mxu0 0.0
        %1460 = vmatprep.subr.mxu0 0.0
        %1461 = vmatpush1.msra.mxu0 0.0
        %1462 = vmatprep.subr.mxu0 0.0
        %1463 = vmatpush1.msra.mxu0 0.0
        %1464 = vmatprep.subr.mxu0 0.0
        %1465 = vmatpush1.msra.mxu0 0.0
        %1466 = vmatprep.subr.mxu0 0.0
        %1467 = vmatpush1.msra.mxu0 0.0
        %1468 = vmatprep.subr.mxu0 0.0
        %1469 = vmatpush1.msra.mxu0 0.0
        %1470 = vmatprep.subr.mxu0 0.0
        %1471 = vmatpush1.msra.mxu0 %v1432
        %1472 = vmatprep.subr.mxu0 0.0
        %1473 = vmatpush2.msra.mxu0 0.0
        %1474 = vmatprep.subr.mxu0 0.0
        %1475 = vmatpush2.msra.mxu0 0.0
        %1476 = vmatprep.subr.mxu0 0.0
        %1477 = vmatpush2.msra.mxu0 0.0
        %1478 = vmatprep.subr.mxu0 0.0
        %1479 = vmatpush2.msra.mxu0 0.0
        %1480 = vmatprep.subr.mxu0 0.0
        %1481 = vmatpush2.msra.mxu0 0.0
        %1482 = vmatprep.subr.mxu0 0.0
        %1483 = vmatpush2.msra.mxu0 0.0
        %1484 = vmatprep.subr.mxu0 0.0
        %1485 = vmatpush2.msra.mxu0 0.0
        %1486 = vmatprep.subr.mxu0 0.0
        %1487 = vmatpush2.msra.mxu0 0.0
        %1488 = vmatprep.subr.mxu0 0.0
        %1489 = vmatpush2.msra.mxu0 0.0
        %1490 = vmatprep.subr.mxu0 0.0
        %1491 = vmatpush2.msra.mxu0 0.0
        %1492 = vmatprep.subr.mxu0 0.0
        %1493 = vmatpush2.msra.mxu0 0.0
        %1494 = vmatprep.subr.mxu0 0.0
        %1495 = vmatpush2.msra.mxu0 0.0
        %1496 = vmatprep.subr.mxu0 0.0
        %1497 = vmatpush2.msra.mxu0 0.0
        %1498 = vmatprep.subr.mxu0 0.0
        %1499 = vmatpush2.msra.mxu0 0.0
        %1500 = vmatprep.subr.mxu0 0.0
        %1501 = vmatpush2.msra.mxu0 0.0
        %1502 = vmatprep.subr.mxu0 0.0
        %1503 = vmatpush2.msra.mxu0 0.0
        %1504 = vmatprep.mubr.f32.mxu0 0.0
        %1505 = vmatmul.mubr.f32.gmra.mxu0 %v1435
        %v1506 = vpop.f32.mrf.mxu0
        %v1507 = vadd.f32 0.0, %v1506
        %v1508 = vpop.f32.mrf.mxu0
        %1509 = vmatprep.mubr.f32.mxu0 0.0
        %1510 = vmatmul.mubr.f32.gmra.mxu0 %v1438
        %v1511 = vpop.f32.mrf.mxu0
        %v1512 = vadd.f32 0.0, %v1511
        %v1513 = vpop.f32.mrf.mxu0
        %1514 = vdwg.mxu0
        %1515 = vrot.lane.b32.xlu0 %v803, 104
        %v1516 = vpop.permute.xlu0 %1515
        %1517 = vrot.lane.b32.xlu0 %v808, 104
        %v1518 = vpop.permute.xlu0 %1517
        %1519 = vrot.lane.b32.xlu0 %v918, 104
        %v1520 = vpop.permute.xlu0 %1519
        %v1521 = vsel %vm562, %v1516, 0
        %v1523 = vsel %vm562, %v1518, 0
        %v1525 = vsel %vm562, %v1520, 0
        %1527 = vmatprep.subr.mxu0 0.0
        %1528 = vmatpush1.xpose.msra.mxu0 0.0
        %1529 = vmatprep.subr.mxu0 0.0
        %1530 = vmatpush1.xpose.msra.mxu0 0.0
        %1531 = vmatprep.subr.mxu0 0.0
        %1532 = vmatpush1.xpose.msra.mxu0 0.0
        %1533 = vmatprep.subr.mxu0 0.0
        %1534 = vmatpush1.xpose.msra.mxu0 0.0
        %1535 = vmatprep.subr.mxu0 0.0
        %1536 = vmatpush1.xpose.msra.mxu0 0.0
        %1537 = vmatprep.subr.mxu0 0.0
        %1538 = vmatpush1.xpose.msra.mxu0 0.0
        %1539 = vmatprep.subr.mxu0 0.0
        %1540 = vmatpush1.xpose.msra.mxu0 0.0
        %1541 = vmatprep.subr.mxu0 0.0
        %1542 = vmatpush1.xpose.msra.mxu0 0.0
        %1543 = vmatprep.subr.mxu0 0.0
        %1544 = vmatpush1.xpose.msra.mxu0 0.0
        %1545 = vmatprep.subr.mxu0 0.0
        %1546 = vmatpush1.xpose.msra.mxu0 0.0
        %1547 = vmatprep.subr.mxu0 0.0
        %1548 = vmatpush1.xpose.msra.mxu0 0.0
        %1549 = vmatprep.subr.mxu0 0.0
        %1550 = vmatpush1.xpose.msra.mxu0 0.0
        %1551 = vmatprep.subr.mxu0 0.0
        %1552 = vmatpush1.xpose.msra.mxu0 0.0
        %1553 = vmatprep.subr.mxu0 0.0
        %1554 = vmatpush1.xpose.msra.mxu0 0.0
        %1555 = vmatprep.subr.mxu0 0.0
        %1556 = vmatpush1.xpose.msra.mxu0 0.0
        %1557 = vmatprep.subr.mxu0 0.0
        %1558 = vmatpush1.xpose.msra.mxu0 %v1525
        %1559 = vmatprep.subr.mxu0 0.0
        %1560 = vmatpush2.xpose.msra.mxu0 0.0
        %1561 = vmatprep.subr.mxu0 0.0
        %1562 = vmatpush2.xpose.msra.mxu0 0.0
        %1563 = vmatprep.subr.mxu0 0.0
        %1564 = vmatpush2.xpose.msra.mxu0 0.0
        %1565 = vmatprep.subr.mxu0 0.0
        %1566 = vmatpush2.xpose.msra.mxu0 0.0
        %1567 = vmatprep.subr.mxu0 0.0
        %1568 = vmatpush2.xpose.msra.mxu0 0.0
        %1569 = vmatprep.subr.mxu0 0.0
        %1570 = vmatpush2.xpose.msra.mxu0 0.0
        %1571 = vmatprep.subr.mxu0 0.0
        %1572 = vmatpush2.xpose.msra.mxu0 0.0
        %1573 = vmatprep.subr.mxu0 0.0
        %1574 = vmatpush2.xpose.msra.mxu0 0.0
        %1575 = vmatprep.subr.mxu0 0.0
        %1576 = vmatpush2.xpose.msra.mxu0 0.0
        %1577 = vmatprep.subr.mxu0 0.0
        %1578 = vmatpush2.xpose.msra.mxu0 0.0
        %1579 = vmatprep.subr.mxu0 0.0
        %1580 = vmatpush2.xpose.msra.mxu0 0.0
        %1581 = vmatprep.subr.mxu0 0.0
        %1582 = vmatpush2.xpose.msra.mxu0 0.0
        %1583 = vmatprep.subr.mxu0 0.0
        %1584 = vmatpush2.xpose.msra.mxu0 0.0
        %1585 = vmatprep.subr.mxu0 0.0
        %1586 = vmatpush2.xpose.msra.mxu0 0.0
        %1587 = vmatprep.subr.mxu0 0.0
        %1588 = vmatpush2.xpose.msra.mxu0 0.0
        %1589 = vmatprep.subr.mxu0 0.0
        %1590 = vmatpush2.xpose.msra.mxu0 0.0
        %1591 = vmatprep.mubr.f32.mxu0 0.0
        %1592 = vmatmul.mubr.f32.gmra.mxu0 %v1521
        %v1593 = vpop.f32.mrf.mxu0
        %v1594 = vadd.f32 0.0, %v1593
        %v1595 = vpop.f32.mrf.mxu0
        %1596 = vmatprep.mubr.f32.mxu0 0.0
        %1597 = vmatmul.mubr.f32.gmra.mxu0 %v1523
        %v1598 = vpop.f32.mrf.mxu0
        %v1599 = vadd.f32 0.0, %v1598
        %v1600 = vpop.f32.mrf.mxu0
        %1601 = vdwg.mxu0
        %v1602 = vmul.f32 %v1594, 0.35355338
        %v1603 = vmul.f32 %v1599, 0.35355338
        %v1604 = vadd.f32 %v1602, %v1011
        %v1605 = vadd.f32 %v1603, %v1011
        %v1606 = vsel %vm562, %v1604, -inf
        %1607 = vmax.xlane.f32.xlu0 %v1606
        %v1608 = vpop.xlane.xlu0 %1607
        %v1609 = vsel %vm562, %v1605, -inf
        %1610 = vmax.xlane.f32.xlu0 %v1609
        %v1611 = vpop.xlane.xlu0 %1610
        %v1612 = vsub.f32 %v1604, %v1608
        %v1613 = vsub.f32 %v1605, %v1611
        %v1614 = vmul.f32 %v1612, 1.442695
        %v1615 = vpow.pop %v1614
        %v1616 = vmul.f32 %v1613, 1.442695
        %v1617 = vpow.pop %v1616
        %v1618 = vsel %vm562, %v1615, 0.0
        %1619 = vadd.xlane.f32.xlu0 %v1618
        %v1620 = vpop.xlane.xlu0 %1619
        %v1621 = vsel %vm562, %v1617, 0.0
        %1622 = vadd.xlane.f32.xlu0 %v1621
        %v1623 = vpop.xlane.xlu0 %1622
        %v1624 = vrcp.pop %v1620
        %v1625 = vmul.f32 %v1615, %v1624
        %v1626 = vrcp.pop %v1623
        %v1627 = vmul.f32 %v1617, %v1626
        %1628 = vrot.lane.b32.xlu0 %v918, 72
        %v1629 = vpop.permute.xlu0 %1628
        %v1632 = vsel %vm562, %v1625, 0
        %v1635 = vsel %vm562, %v1627, 0
        %1637 = vmatprep.subr.mxu0 0.0
        %1638 = vmatpush1.msra.mxu0 0.0
        %1639 = vmatprep.subr.mxu0 0.0
        %1640 = vmatpush1.msra.mxu0 0.0
        %1641 = vmatprep.subr.mxu0 0.0
        %1642 = vmatpush1.msra.mxu0 0.0
        %1643 = vmatprep.subr.mxu0 0.0
        %1644 = vmatpush1.msra.mxu0 0.0
        %1645 = vmatprep.subr.mxu0 0.0
        %1646 = vmatpush1.msra.mxu0 0.0
        %1647 = vmatprep.subr.mxu0 0.0
        %1648 = vmatpush1.msra.mxu0 0.0
        %1649 = vmatprep.subr.mxu0 0.0
        %1650 = vmatpush1.msra.mxu0 0.0
        %1651 = vmatprep.subr.mxu0 0.0
        %1652 = vmatpush1.msra.mxu0 0.0
        %1653 = vmatprep.subr.mxu0 0.0
        %1654 = vmatpush1.msra.mxu0 0.0
        %1655 = vmatprep.subr.mxu0 0.0
        %1656 = vmatpush1.msra.mxu0 0.0
        %1657 = vmatprep.subr.mxu0 0.0
        %1658 = vmatpush1.msra.mxu0 0.0
        %1659 = vmatprep.subr.mxu0 0.0
        %1660 = vmatpush1.msra.mxu0 0.0
        %1661 = vmatprep.subr.mxu0 0.0
        %1662 = vmatpush1.msra.mxu0 0.0
        %1663 = vmatprep.subr.mxu0 0.0
        %1664 = vmatpush1.msra.mxu0 0.0
        %1665 = vmatprep.subr.mxu0 0.0
        %1666 = vmatpush1.msra.mxu0 0.0
        %1667 = vmatprep.subr.mxu0 0.0
        %1668 = vmatpush1.msra.mxu0 %v1629
        %1669 = vmatprep.subr.mxu0 0.0
        %1670 = vmatpush2.msra.mxu0 0.0
        %1671 = vmatprep.subr.mxu0 0.0
        %1672 = vmatpush2.msra.mxu0 0.0
        %1673 = vmatprep.subr.mxu0 0.0
        %1674 = vmatpush2.msra.mxu0 0.0
        %1675 = vmatprep.subr.mxu0 0.0
        %1676 = vmatpush2.msra.mxu0 0.0
        %1677 = vmatprep.subr.mxu0 0.0
        %1678 = vmatpush2.msra.mxu0 0.0
        %1679 = vmatprep.subr.mxu0 0.0
        %1680 = vmatpush2.msra.mxu0 0.0
        %1681 = vmatprep.subr.mxu0 0.0
        %1682 = vmatpush2.msra.mxu0 0.0
        %1683 = vmatprep.subr.mxu0 0.0
        %1684 = vmatpush2.msra.mxu0 0.0
        %1685 = vmatprep.subr.mxu0 0.0
        %1686 = vmatpush2.msra.mxu0 0.0
        %1687 = vmatprep.subr.mxu0 0.0
        %1688 = vmatpush2.msra.mxu0 0.0
        %1689 = vmatprep.subr.mxu0 0.0
        %1690 = vmatpush2.msra.mxu0 0.0
        %1691 = vmatprep.subr.mxu0 0.0
        %1692 = vmatpush2.msra.mxu0 0.0
        %1693 = vmatprep.subr.mxu0 0.0
        %1694 = vmatpush2.msra.mxu0 0.0
        %1695 = vmatprep.subr.mxu0 0.0
        %1696 = vmatpush2.msra.mxu0 0.0
        %1697 = vmatprep.subr.mxu0 0.0
        %1698 = vmatpush2.msra.mxu0 0.0
        %1699 = vmatprep.subr.mxu0 0.0
        %1700 = vmatpush2.msra.mxu0 0.0
        %1701 = vmatprep.mubr.f32.mxu0 0.0
        %1702 = vmatmul.mubr.f32.gmra.mxu0 %v1632
        %v1703 = vpop.f32.mrf.mxu0
        %v1704 = vadd.f32 0.0, %v1703
        %v1705 = vpop.f32.mrf.mxu0
        %1706 = vmatprep.mubr.f32.mxu0 0.0
        %1707 = vmatmul.mubr.f32.gmra.mxu0 %v1635
        %v1708 = vpop.f32.mrf.mxu0
        %v1709 = vadd.f32 0.0, %v1708
        %v1710 = vpop.f32.mrf.mxu0
        %1711 = vdwg.mxu0
        %1714 = vrot.lane.b32.xlu0 %v1310, 8
        %v1715 = vpop.permute.xlu0 %1714
        %1716 = vrot.lane.b32.xlu0 %v1315, 8
        %v1717 = vpop.permute.xlu0 %1716
        %1722 = vrot.lane.b32.xlu0 %v1507, 16
        %v1723 = vpop.permute.xlu0 %1722
        %1724 = vrot.lane.b32.xlu0 %v1512, 16
        %v1725 = vpop.permute.xlu0 %1724
        %1730 = vrot.lane.b32.xlu0 %v1704, 24
        %v1731 = vpop.permute.xlu0 %1730
        %1732 = vrot.lane.b32.xlu0 %v1709, 24
        %v1733 = vpop.permute.xlu0 %1732
        %v1736 = vsel %vm562, %v1113, %v1715
        %v1737 = vsel %vm562, %v1118, %v1717
        %v1738 = vsel %vm456, %v1736, %v1723
        %v1739 = vsel %vm456, %v1737, %v1725
        %vm1740 = vcmask 195584
        %v1741 = vsel %vm1740, %v1738, %v1731
        %v1742 = vsel %vm1740, %v1739, %v1733
        %v1743 = vld [vmem:[%s7 + $0x60] sm:$0xff]
        %v1744 = vld [vmem:[%s7 + $0x68] sm:$0xff]
        %v1745 = vld [vmem:[%s7 + $0x70] sm:$0xff]
        %v1746 = vld [vmem:[%s7 + $0x78] sm:$0xff]
        %v1747 = vld [vmem:[%s9 + $0x4] sm:$0x1]
        %v1748 = vlaneseq
        %v1749 = vshrl.u32 %v1748, 7
        %v1750 = vsub.s32 0, %v1749
        %v1751 = vrot.slane %v1747, %v1750
        %v1753 = vsel %vm717, %v1741, 0
        %v1756 = vsel %vm717, %v1742, 0
        %v1759 = vsel %vm717, %v1743, 0
        %v1762 = vsel %vm717, %v1744, 0
        %v1765 = vsel %vm717, %v1745, 0
        %v1768 = vsel %vm717, %v1746, 0
        %1770 = vmatprep.subr.mxu0 0.0
        %1771 = vmatpush1.xpose.msra.mxu0 0.0
        %1772 = vmatprep.subr.mxu0 0.0
        %1773 = vmatpush1.xpose.msra.mxu0 0.0
        %1774 = vmatprep.subr.mxu0 0.0
        %1775 = vmatpush1.xpose.msra.mxu0 0.0
        %1776 = vmatprep.subr.mxu0 0.0
        %1777 = vmatpush1.xpose.msra.mxu0 0.0
        %1778 = vmatprep.subr.mxu0 0.0
        %1779 = vmatpush1.xpose.msra.mxu0 0.0
        %1780 = vmatprep.subr.mxu0 0.0
        %1781 = vmatpush1.xpose.msra.mxu0 0.0
        %1782 = vmatprep.subr.mxu0 0.0
        %1783 = vmatpush1.xpose.msra.mxu0 0.0
        %1784 = vmatprep.subr.mxu0 0.0
        %1785 = vmatpush1.xpose.msra.mxu0 0.0
        %1786 = vmatprep.subr.mxu0 0.0
        %1787 = vmatpush1.xpose.msra.mxu0 0.0
        %1788 = vmatprep.subr.mxu0 0.0
        %1789 = vmatpush1.xpose.msra.mxu0 0.0
        %1790 = vmatprep.subr.mxu0 0.0
        %1791 = vmatpush1.xpose.msra.mxu0 0.0
        %1792 = vmatprep.subr.mxu0 0.0
        %1793 = vmatpush1.xpose.msra.mxu0 0.0
        %1794 = vmatprep.subr.mxu0 0.0
        %1795 = vmatpush1.xpose.msra.mxu0 %v1768
        %1796 = vmatprep.subr.mxu0 0.0
        %1797 = vmatpush1.xpose.msra.mxu0 %v1765
        %1798 = vmatprep.subr.mxu0 0.0
        %1799 = vmatpush1.xpose.msra.mxu0 %v1762
        %1800 = vmatprep.subr.mxu0 0.0
        %1801 = vmatpush1.xpose.msra.mxu0 %v1759
        %1802 = vmatprep.subr.mxu0 0.0
        %1803 = vmatpush2.xpose.msra.mxu0 0.0
        %1804 = vmatprep.subr.mxu0 0.0
        %1805 = vmatpush2.xpose.msra.mxu0 0.0
        %1806 = vmatprep.subr.mxu0 0.0
        %1807 = vmatpush2.xpose.msra.mxu0 0.0
        %1808 = vmatprep.subr.mxu0 0.0
        %1809 = vmatpush2.xpose.msra.mxu0 0.0
        %1810 = vmatprep.subr.mxu0 0.0
        %1811 = vmatpush2.xpose.msra.mxu0 0.0
        %1812 = vmatprep.subr.mxu0 0.0
        %1813 = vmatpush2.xpose.msra.mxu0 0.0
        %1814 = vmatprep.subr.mxu0 0.0
        %1815 = vmatpush2.xpose.msra.mxu0 0.0
        %1816 = vmatprep.subr.mxu0 0.0
        %1817 = vmatpush2.xpose.msra.mxu0 0.0
        %1818 = vmatprep.subr.mxu0 0.0
        %1819 = vmatpush2.xpose.msra.mxu0 0.0
        %1820 = vmatprep.subr.mxu0 0.0
        %1821 = vmatpush2.xpose.msra.mxu0 0.0
        %1822 = vmatprep.subr.mxu0 0.0
        %1823 = vmatpush2.xpose.msra.mxu0 0.0
        %1824 = vmatprep.subr.mxu0 0.0
        %1825 = vmatpush2.xpose.msra.mxu0 0.0
        %1826 = vmatprep.subr.mxu0 0.0
        %1827 = vmatpush2.xpose.msra.mxu0 0.0
        %1828 = vmatprep.subr.mxu0 0.0
        %1829 = vmatpush2.xpose.msra.mxu0 0.0
        %1830 = vmatprep.subr.mxu0 0.0
        %1831 = vmatpush2.xpose.msra.mxu0 0.0
        %1832 = vmatprep.subr.mxu0 0.0
        %1833 = vmatpush2.xpose.msra.mxu0 0.0
        %1834 = vmatprep.mubr.f32.mxu0 0.0
        %1835 = vmatmul.mubr.f32.gmra.mxu0 %v1753
        %v1836 = vpop.f32.mrf.mxu0
        %v1837 = vadd.f32 %v1751, %v1836
        %v1838 = vpop.f32.mrf.mxu0
        %1839 = vmatprep.mubr.f32.mxu0 0.0
        %1840 = vmatmul.mubr.f32.gmra.mxu0 %v1756
        %v1841 = vpop.f32.mrf.mxu0
        %v1842 = vadd.f32 %v1751, %v1841
        %v1843 = vpop.f32.mrf.mxu0
        %1844 = vdwg.mxu0
        %v1845 = vadd.f32 %v706, %v1837
        %v1846 = vadd.f32 %v707, %v1842
        %v1847 = vld [vmem:[%s9 + $0x5] sm:$0x1]
        %v1848 = vld [vmem:[%s9 + $0x6] sm:$0x1]
        %v1849 = vsel %vm717, %v1845, 0.0
        %1850 = vadd.xlane.f32.xlu0 %v1849
        %v1851 = vpop.xlane.xlu0 %1850
        %v1852 = vsel %vm717, %v1846, 0.0
        %1853 = vadd.xlane.f32.xlu0 %v1852
        %v1854 = vpop.xlane.xlu0 %1853
        %v1855 = vrcp.pop 32.0
        %v1856 = vmul.f32 %v1851, %v1855
        %v1857 = vmul.f32 %v1854, %v1855
        %v1858 = vsub.f32 %v1845, %v1856
        %v1859 = vsub.f32 %v1846, %v1857
        %v1860 = vmul.f32 %v1858, %v1858
        %v1861 = vmul.f32 %v1859, %v1859
        %v1862 = vsel %vm717, %v1860, 0.0
        %1863 = vadd.xlane.f32.xlu0 %v1862
        %v1864 = vpop.xlane.xlu0 %1863
        %v1865 = vsel %vm717, %v1861, 0.0
        %1866 = vadd.xlane.f32.xlu0 %v1865
        %v1867 = vpop.xlane.xlu0 %1866
        %v1868 = vmul.f32 %v1864, %v1855
        %v1869 = vmul.f32 %v1867, %v1855
        %v1870 = vadd.f32 %v1868, 1e-05
        %v1871 = vadd.f32 %v1869, 1e-05
        %v1872 = vrsqrt.pop %v1870
        %v1873 = vmul.f32 %v1870, %v1872
        %vm1874 = vcmp.eq.f32.partialorder %v1870, inf
        %v1875 = vsel %vm1874, %v1870, %v1873
        %vm1876 = vcmp.eq.f32.partialorder %v1870, 0.0
        %v1877 = vand.u32 %v1870, 2147483648
        %v1878 = vsel %vm1876, %v1877, %v1875
        %v1879 = vrsqrt.pop %v1871
        %v1880 = vmul.f32 %v1871, %v1879
        %vm1881 = vcmp.eq.f32.partialorder %v1871, inf
        %v1882 = vsel %vm1881, %v1871, %v1880
        %vm1883 = vcmp.eq.f32.partialorder %v1871, 0.0
        %v1884 = vand.u32 %v1871, 2147483648
        %v1885 = vsel %vm1883, %v1884, %v1882
        %v1886 = vrcp.pop %v1878
        %v1887 = vmul.f32 %v1858, %v1886
        %v1888 = vrcp.pop %v1885
        %v1889 = vmul.f32 %v1859, %v1888
        %v1890 = vlaneseq
        %v1891 = vshrl.u32 %v1890, 7
        %v1892 = vsub.s32 0, %v1891
        %v1893 = vrot.slane %v1847, %v1892
        %v1894 = vmul.f32 %v1887, %v1893
        %v1895 = vmul.f32 %v1889, %v1893
        %v1896 = vlaneseq
        %v1897 = vshrl.u32 %v1896, 7
        %v1898 = vsub.s32 0, %v1897
        %v1899 = vrot.slane %v1848, %v1898
        %v1900 = vadd.f32 %v1894, %v1899
        %v1901 = vadd.f32 %v1895, %v1899
        %v1902 = vld [vmem:[%s7 + $0x80] sm:$0xff]
        %v1903 = vld [vmem:[%s7 + $0x88] sm:$0xff]
        %v1904 = vld [vmem:[%s7 + $0x90] sm:$0xff]
        %v1905 = vld [vmem:[%s7 + $0x98] sm:$0xff]
        %v1906 = vld [vmem:[%s7 + $0xa0] sm:$0xff]
        %v1907 = vld [vmem:[%s7 + $0xa8] sm:$0xff]
        %v1908 = vld [vmem:[%s7 + $0xb0] sm:$0xff]
        %v1909 = vld [vmem:[%s7 + $0xb8] sm:$0xff]
        %v1910 = vld [vmem:[%s7 + $0xc0] sm:$0xff]
        %v1911 = vld [vmem:[%s7 + $0xc8] sm:$0xff]
        %v1912 = vld [vmem:[%s7 + $0xd0] sm:$0xff]
        %v1913 = vld [vmem:[%s7 + $0xd8] sm:$0xff]
        %v1914 = vld [vmem:[%s7 + $0xe0] sm:$0xff]
        %v1915 = vld [vmem:[%s7 + $0xe8] sm:$0xff]
        %v1916 = vld [vmem:[%s7 + $0xf0] sm:$0xff]
        %v1917 = vld [vmem:[%s7 + $0xf8] sm:$0xff]
        %v1918 = vld [vmem:[%s9 + $0x7] sm:$0x1]
        %v1919 = vlaneseq
        %v1920 = vshrl.u32 %v1919, 7
        %v1921 = vsub.s32 0, %v1920
        %v1922 = vrot.slane %v1918, %v1921
        %v1924 = vsel %vm717, %v1900, 0
        %v1927 = vsel %vm717, %v1901, 0
        %v1930 = vsel %vm717, %v1902, 0
        %v1933 = vsel %vm717, %v1903, 0
        %v1936 = vsel %vm717, %v1904, 0
        %v1939 = vsel %vm717, %v1905, 0
        %v1942 = vsel %vm717, %v1906, 0
        %v1945 = vsel %vm717, %v1907, 0
        %v1948 = vsel %vm717, %v1908, 0
        %v1951 = vsel %vm717, %v1909, 0
        %v1954 = vsel %vm717, %v1910, 0
        %v1957 = vsel %vm717, %v1911, 0
        %v1960 = vsel %vm717, %v1912, 0
        %v1963 = vsel %vm717, %v1913, 0
        %v1966 = vsel %vm717, %v1914, 0
        %v1969 = vsel %vm717, %v1915, 0
        %v1972 = vsel %vm717, %v1916, 0
        %v1975 = vsel %vm717, %v1917, 0
        %1977 = vmatprep.subr.mxu0 0.0
        %1978 = vmatpush1.xpose.msra.mxu0 %v1975
        %1979 = vmatprep.subr.mxu0 0.0
        %1980 = vmatpush1.xpose.msra.mxu0 %v1972
        %1981 = vmatprep.subr.mxu0 0.0
        %1982 = vmatpush1.xpose.msra.mxu0 %v1969
        %1983 = vmatprep.subr.mxu0 0.0
        %1984 = vmatpush1.xpose.msra.mxu0 %v1966
        %1985 = vmatprep.subr.mxu0 0.0
        %1986 = vmatpush1.xpose.msra.mxu0 %v1963
        %1987 = vmatprep.subr.mxu0 0.0
        %1988 = vmatpush1.xpose.msra.mxu0 %v1960
        %1989 = vmatprep.subr.mxu0 0.0
        %1990 = vmatpush1.xpose.msra.mxu0 %v1957
        %1991 = vmatprep.subr.mxu0 0.0
        %1992 = vmatpush1.xpose.msra.mxu0 %v1954
        %1993 = vmatprep.subr.mxu0 0.0
        %1994 = vmatpush1.xpose.msra.mxu0 %v1951
        %1995 = vmatprep.subr.mxu0 0.0
        %1996 = vmatpush1.xpose.msra.mxu0 %v1948
        %1997 = vmatprep.subr.mxu0 0.0
        %1998 = vmatpush1.xpose.msra.mxu0 %v1945
        %1999 = vmatprep.subr.mxu0 0.0
        %2000 = vmatpush1.xpose.msra.mxu0 %v1942
        %2001 = vmatprep.subr.mxu0 0.0
        %2002 = vmatpush1.xpose.msra.mxu0 %v1939
        %2003 = vmatprep.subr.mxu0 0.0
        %2004 = vmatpush1.xpose.msra.mxu0 %v1936
        %2005 = vmatprep.subr.mxu0 0.0
        %2006 = vmatpush1.xpose.msra.mxu0 %v1933
        %2007 = vmatprep.subr.mxu0 0.0
        %2008 = vmatpush1.xpose.msra.mxu0 %v1930
        %2009 = vmatprep.subr.mxu0 0.0
        %2010 = vmatpush2.xpose.msra.mxu0 0.0
        %2011 = vmatprep.subr.mxu0 0.0
        %2012 = vmatpush2.xpose.msra.mxu0 0.0
        %2013 = vmatprep.subr.mxu0 0.0
        %2014 = vmatpush2.xpose.msra.mxu0 0.0
        %2015 = vmatprep.subr.mxu0 0.0
        %2016 = vmatpush2.xpose.msra.mxu0 0.0
        %2017 = vmatprep.subr.mxu0 0.0
        %2018 = vmatpush2.xpose.msra.mxu0 0.0
        %2019 = vmatprep.subr.mxu0 0.0
        %2020 = vmatpush2.xpose.msra.mxu0 0.0
        %2021 = vmatprep.subr.mxu0 0.0
        %2022 = vmatpush2.xpose.msra.mxu0 0.0
        %2023 = vmatprep.subr.mxu0 0.0
        %2024 = vmatpush2.xpose.msra.mxu0 0.0
        %2025 = vmatprep.subr.mxu0 0.0
        %2026 = vmatpush2.xpose.msra.mxu0 0.0
        %2027 = vmatprep.subr.mxu0 0.0
        %2028 = vmatpush2.xpose.msra.mxu0 0.0
        %2029 = vmatprep.subr.mxu0 0.0
        %2030 = vmatpush2.xpose.msra.mxu0 0.0
        %2031 = vmatprep.subr.mxu0 0.0
        %2032 = vmatpush2.xpose.msra.mxu0 0.0
        %2033 = vmatprep.subr.mxu0 0.0
        %2034 = vmatpush2.xpose.msra.mxu0 0.0
        %2035 = vmatprep.subr.mxu0 0.0
        %2036 = vmatpush2.xpose.msra.mxu0 0.0
        %2037 = vmatprep.subr.mxu0 0.0
        %2038 = vmatpush2.xpose.msra.mxu0 0.0
        %2039 = vmatprep.subr.mxu0 0.0
        %2040 = vmatpush2.xpose.msra.mxu0 0.0
        %2041 = vmatprep.mubr.f32.mxu0 0.0
        %2042 = vmatmul.mubr.f32.gmra.mxu0 %v1924
        %v2043 = vpop.f32.mrf.mxu0
        %v2044 = vadd.f32 %v1922, %v2043
        %v2045 = vpop.f32.mrf.mxu0
        %2046 = vmatprep.mubr.f32.mxu0 0.0
        %2047 = vmatmul.mubr.f32.gmra.mxu0 %v1927
        %v2048 = vpop.f32.mrf.mxu0
        %v2049 = vadd.f32 %v1922, %v2048
        %v2050 = vpop.f32.mrf.mxu0
        %2051 = vdwg.mxu0
        %v2052 = vmax.f32 %v2044, 0.0
        %v2053 = vmax.f32 %v2049, 0.0
        %v2054 = vld [vmem:[%s8] sm:$0xff]
        %v2055 = vld [vmem:[%s8 + $0x8] sm:$0xff]
        %v2056 = vld [vmem:[%s8 + $0x10] sm:$0xff]
        %v2057 = vld [vmem:[%s8 + $0x18] sm:$0xff]
        %v2058 = vld [vmem:[%s9 + $0x8] sm:$0x1]
        %v2059 = vlaneseq
        %v2060 = vshrl.u32 %v2059, 7
        %v2061 = vsub.s32 0, %v2060
        %v2062 = vrot.slane %v2058, %v2061
        %2063 = vmatprep.subr.mxu0 0.0
        %2064 = vmatpush1.xpose.msra.mxu0 0.0
        %2065 = vmatprep.subr.mxu0 0.0
        %2066 = vmatpush1.xpose.msra.mxu0 0.0
        %2067 = vmatprep.subr.mxu0 0.0
        %2068 = vmatpush1.xpose.msra.mxu0 0.0
        %2069 = vmatprep.subr.mxu0 0.0
        %2070 = vmatpush1.xpose.msra.mxu0 0.0
        %2071 = vmatprep.subr.mxu0 0.0
        %2072 = vmatpush1.xpose.msra.mxu0 0.0
        %2073 = vmatprep.subr.mxu0 0.0
        %2074 = vmatpush1.xpose.msra.mxu0 0.0
        %2075 = vmatprep.subr.mxu0 0.0
        %2076 = vmatpush1.xpose.msra.mxu0 0.0
        %2077 = vmatprep.subr.mxu0 0.0
        %2078 = vmatpush1.xpose.msra.mxu0 0.0
        %2079 = vmatprep.subr.mxu0 0.0
        %2080 = vmatpush1.xpose.msra.mxu0 0.0
        %2081 = vmatprep.subr.mxu0 0.0
        %2082 = vmatpush1.xpose.msra.mxu0 0.0
        %2083 = vmatprep.subr.mxu0 0.0
        %2084 = vmatpush1.xpose.msra.mxu0 0.0
        %2085 = vmatprep.subr.mxu0 0.0
        %2086 = vmatpush1.xpose.msra.mxu0 0.0
        %2087 = vmatprep.subr.mxu0 0.0
        %2088 = vmatpush1.xpose.msra.mxu0 %v2057
        %2089 = vmatprep.subr.mxu0 0.0
        %2090 = vmatpush1.xpose.msra.mxu0 %v2056
        %2091 = vmatprep.subr.mxu0 0.0
        %2092 = vmatpush1.xpose.msra.mxu0 %v2055
        %2093 = vmatprep.subr.mxu0 0.0
        %2094 = vmatpush1.xpose.msra.mxu0 %v2054
        %2095 = vmatprep.subr.mxu0 0.0
        %2096 = vmatpush2.xpose.msra.mxu0 0.0
        %2097 = vmatprep.subr.mxu0 0.0
        %2098 = vmatpush2.xpose.msra.mxu0 0.0
        %2099 = vmatprep.subr.mxu0 0.0
        %2100 = vmatpush2.xpose.msra.mxu0 0.0
        %2101 = vmatprep.subr.mxu0 0.0
        %2102 = vmatpush2.xpose.msra.mxu0 0.0
        %2103 = vmatprep.subr.mxu0 0.0
        %2104 = vmatpush2.xpose.msra.mxu0 0.0
        %2105 = vmatprep.subr.mxu0 0.0
        %2106 = vmatpush2.xpose.msra.mxu0 0.0
        %2107 = vmatprep.subr.mxu0 0.0
        %2108 = vmatpush2.xpose.msra.mxu0 0.0
        %2109 = vmatprep.subr.mxu0 0.0
        %2110 = vmatpush2.xpose.msra.mxu0 0.0
        %2111 = vmatprep.subr.mxu0 0.0
        %2112 = vmatpush2.xpose.msra.mxu0 0.0
        %2113 = vmatprep.subr.mxu0 0.0
        %2114 = vmatpush2.xpose.msra.mxu0 0.0
        %2115 = vmatprep.subr.mxu0 0.0
        %2116 = vmatpush2.xpose.msra.mxu0 0.0
        %2117 = vmatprep.subr.mxu0 0.0
        %2118 = vmatpush2.xpose.msra.mxu0 0.0
        %2119 = vmatprep.subr.mxu0 0.0
        %2120 = vmatpush2.xpose.msra.mxu0 0.0
        %2121 = vmatprep.subr.mxu0 0.0
        %2122 = vmatpush2.xpose.msra.mxu0 0.0
        %2123 = vmatprep.subr.mxu0 0.0
        %2124 = vmatpush2.xpose.msra.mxu0 0.0
        %2125 = vmatprep.subr.mxu0 0.0
        %2126 = vmatpush2.xpose.msra.mxu0 0.0
        %2127 = vmatprep.mubr.f32.mxu0 0.0
        %2128 = vmatmul.mubr.f32.gmra.mxu0 %v2052
        %v2129 = vpop.f32.mrf.mxu0
        %v2130 = vadd.f32 %v2062, %v2129
        %v2131 = vpop.f32.mrf.mxu0
        %2132 = vmatprep.mubr.f32.mxu0 0.0
        %2133 = vmatmul.mubr.f32.gmra.mxu0 %v2053
        %v2134 = vpop.f32.mrf.mxu0
        %v2135 = vadd.f32 %v2062, %v2134
        %v2136 = vpop.f32.mrf.mxu0
        %2137 = vdwg.mxu0
        %v2138 = vadd.f32 %v1900, %v2130
        %v2139 = vadd.f32 %v1901, %v2135
        %v2140 = vld [vmem:[%s9 + $0x9] sm:$0x1]
        %v2141 = vld [vmem:[%s9 + $0xa] sm:$0x1]
        %v2142 = vsel %vm717, %v2138, 0.0
        %2143 = vadd.xlane.f32.xlu0 %v2142
        %v2144 = vpop.xlane.xlu0 %2143
        %v2145 = vsel %vm717, %v2139, 0.0
        %2146 = vadd.xlane.f32.xlu0 %v2145
        %v2147 = vpop.xlane.xlu0 %2146
        %v2148 = vmul.f32 %v2144, %v1855
        %v2149 = vmul.f32 %v2147, %v1855
        %v2150 = vsub.f32 %v2138, %v2148
        %v2151 = vsub.f32 %v2139, %v2149
        %v2152 = vmul.f32 %v2150, %v2150
        %v2153 = vmul.f32 %v2151, %v2151
        %v2154 = vsel %vm717, %v2152, 0.0
        %2155 = vadd.xlane.f32.xlu0 %v2154
        %v2156 = vpop.xlane.xlu0 %2155
        %v2157 = vsel %vm717, %v2153, 0.0
        %2158 = vadd.xlane.f32.xlu0 %v2157
        %v2159 = vpop.xlane.xlu0 %2158
        %v2160 = vmul.f32 %v2156, %v1855
        %v2161 = vmul.f32 %v2159, %v1855
        %v2162 = vadd.f32 %v2160, 1e-05
        %v2163 = vadd.f32 %v2161, 1e-05
        %v2164 = vrsqrt.pop %v2162
        %v2165 = vmul.f32 %v2162, %v2164
        %vm2166 = vcmp.eq.f32.partialorder %v2162, inf
        %v2167 = vsel %vm2166, %v2162, %v2165
        %vm2168 = vcmp.eq.f32.partialorder %v2162, 0.0
        %v2169 = vand.u32 %v2162, 2147483648
        %v2170 = vsel %vm2168, %v2169, %v2167
        %v2171 = vrsqrt.pop %v2163
        %v2172 = vmul.f32 %v2163, %v2171
        %vm2173 = vcmp.eq.f32.partialorder %v2163, inf
        %v2174 = vsel %vm2173, %v2163, %v2172
        %vm2175 = vcmp.eq.f32.partialorder %v2163, 0.0
        %v2176 = vand.u32 %v2163, 2147483648
        %v2177 = vsel %vm2175, %v2176, %v2174
        %v2178 = vrcp.pop %v2170
        %v2179 = vmul.f32 %v2150, %v2178
        %v2180 = vrcp.pop %v2177
        %v2181 = vmul.f32 %v2151, %v2180
        %v2182 = vlaneseq
        %v2183 = vshrl.u32 %v2182, 7
        %v2184 = vsub.s32 0, %v2183
        %v2185 = vrot.slane %v2140, %v2184
        %v2186 = vmul.f32 %v2179, %v2185
        %v2187 = vmul.f32 %v2181, %v2185
        %v2188 = vlaneseq
        %v2189 = vshrl.u32 %v2188, 7
        %v2190 = vsub.s32 0, %v2189
        %v2191 = vrot.slane %v2141, %v2190
        %v2192 = vadd.f32 %v2186, %v2191
        %v2193 = vadd.f32 %v2187, %v2191
        %v2194 = vld [vmem:[%s7 + $0x100] sm:$0xff]
        %v2195 = vld [vmem:[%s10] sm:$0xff]
        %2197 = vset.pattern.permute.xlu0 0
        %2198 = vperm.xlu0 %2197, %v2195
        %v2199 = vpop.permute.xlu0 %2198
        %v2202 = vsel %vm717, %v2194, 0
        %v2205 = vsel %vm717, %v2192, 0
        %v2208 = vsel %vm717, %v2193, 0
        %2210 = vmatprep.subr.mxu0 0.0
        %2211 = vmatpush1.xpose.msra.mxu0 0.0
        %2212 = vmatprep.subr.mxu0 0.0
        %2213 = vmatpush1.xpose.msra.mxu0 0.0
        %2214 = vmatprep.subr.mxu0 0.0
        %2215 = vmatpush1.xpose.msra.mxu0 0.0
        %2216 = vmatprep.subr.mxu0 0.0
        %2217 = vmatpush1.xpose.msra.mxu0 0.0
        %2218 = vmatprep.subr.mxu0 0.0
        %2219 = vmatpush1.xpose.msra.mxu0 0.0
        %2220 = vmatprep.subr.mxu0 0.0
        %2221 = vmatpush1.xpose.msra.mxu0 0.0
        %2222 = vmatprep.subr.mxu0 0.0
        %2223 = vmatpush1.xpose.msra.mxu0 0.0
        %2224 = vmatprep.subr.mxu0 0.0
        %2225 = vmatpush1.xpose.msra.mxu0 0.0
        %2226 = vmatprep.subr.mxu0 0.0
        %2227 = vmatpush1.xpose.msra.mxu0 0.0
        %2228 = vmatprep.subr.mxu0 0.0
        %2229 = vmatpush1.xpose.msra.mxu0 0.0
        %2230 = vmatprep.subr.mxu0 0.0
        %2231 = vmatpush1.xpose.msra.mxu0 0.0
        %2232 = vmatprep.subr.mxu0 0.0
        %2233 = vmatpush1.xpose.msra.mxu0 0.0
        %2234 = vmatprep.subr.mxu0 0.0
        %2235 = vmatpush1.xpose.msra.mxu0 0.0
        %2236 = vmatprep.subr.mxu0 0.0
        %2237 = vmatpush1.xpose.msra.mxu0 0.0
        %2238 = vmatprep.subr.mxu0 0.0
        %2239 = vmatpush1.xpose.msra.mxu0 %v2208
        %2240 = vmatprep.subr.mxu0 0.0
        %2241 = vmatpush1.xpose.msra.mxu0 %v2205
        %2242 = vmatprep.subr.mxu0 0.0
        %2243 = vmatpush2.xpose.msra.mxu0 0.0
        %2244 = vmatprep.subr.mxu0 0.0
        %2245 = vmatpush2.xpose.msra.mxu0 0.0
        %2246 = vmatprep.subr.mxu0 0.0
        %2247 = vmatpush2.xpose.msra.mxu0 0.0
        %2248 = vmatprep.subr.mxu0 0.0
        %2249 = vmatpush2.xpose.msra.mxu0 0.0
        %2250 = vmatprep.subr.mxu0 0.0
        %2251 = vmatpush2.xpose.msra.mxu0 0.0
        %2252 = vmatprep.subr.mxu0 0.0
        %2253 = vmatpush2.xpose.msra.mxu0 0.0
        %2254 = vmatprep.subr.mxu0 0.0
        %2255 = vmatpush2.xpose.msra.mxu0 0.0
        %2256 = vmatprep.subr.mxu0 0.0
        %2257 = vmatpush2.xpose.msra.mxu0 0.0
        %2258 = vmatprep.subr.mxu0 0.0
        %2259 = vmatpush2.xpose.msra.mxu0 0.0
        %2260 = vmatprep.subr.mxu0 0.0
        %2261 = vmatpush2.xpose.msra.mxu0 0.0
        %2262 = vmatprep.subr.mxu0 0.0
        %2263 = vmatpush2.xpose.msra.mxu0 0.0
        %2264 = vmatprep.subr.mxu0 0.0
        %2265 = vmatpush2.xpose.msra.mxu0 0.0
        %2266 = vmatprep.subr.mxu0 0.0
        %2267 = vmatpush2.xpose.msra.mxu0 0.0
        %2268 = vmatprep.subr.mxu0 0.0
        %2269 = vmatpush2.xpose.msra.mxu0 0.0
        %2270 = vmatprep.subr.mxu0 0.0
        %2271 = vmatpush2.xpose.msra.mxu0 0.0
        %2272 = vmatprep.subr.mxu0 0.0
        %2273 = vmatpush2.xpose.msra.mxu0 0.0
        %2274 = vmatprep.mubr.f32.mxu0 0.0
        %2275 = vmatmul.mubr.f32.gmra.mxu0 %v2202
        %v2276 = vpop.f32.mrf.mxu0
        %v2277 = vadd.f32 %v2199, %v2276
        %v2278 = vpop.f32.mrf.mxu0
        %2279 = vdwg.mxu0
        %v2280 = vmul.f32 %v2277, %v2277
        %v2281 = vsel %vm456, %v2280, 0.0
        %v2282 = vrot.slane %v2281, 4
        %v2283 = vadd.f32 %v2281, %v2282
        %v2284 = vrot.slane %v2283, 2
        %v2285 = vadd.f32 %v2283, %v2284
        %v2286 = vrot.slane %v2285, 1
        %v2287 = vadd.f32 %v2285, %v2286
        %v2288 = vsel %vm456, %v2287, 0.0
        %2289 = vadd.xlane.f32.xlu0 %v2288
        %v2290 = vpop.xlane.xlu0 %2289
        %v2291 = vrcp.pop 16.0
        %v2292 = vmul.f32 %v2290, %v2291
        %v2293 = vrsqrt.pop %v2292
        %v2294 = vmul.f32 %v2292, %v2293
        %vm2295 = vcmp.eq.f32.partialorder %v2292, inf
        %v2296 = vsel %vm2295, %v2292, %v2294
        %vm2297 = vcmp.eq.f32.partialorder %v2292, 0.0
        %v2298 = vand.u32 %v2292, 2147483648
        %v2299 = vsel %vm2297, %v2298, %v2296
        %v2300 = vmax.f32 %v2299, 1e-05
        %v2301 = vrcp.pop %v2300
        %v2302 = vmul.f32 %v2277, %v2301
        %v2303 = vmul.f32 %v449, 0.4255575
        %v2304 = vmul.f32 %v2302, 0.5744425
        %v2305 = vadd.f32 %v2303, %v2304
        %v2306 = vmul.f32 %v2305, %v2305
        %v2307 = vsel %vm456, %v2306, 0.0
        %v2308 = vrot.slane %v2307, 4
        %v2309 = vadd.f32 %v2307, %v2308
        %v2310 = vrot.slane %v2309, 2
        %v2311 = vadd.f32 %v2309, %v2310
        %v2312 = vrot.slane %v2311, 1
        %v2313 = vadd.f32 %v2311, %v2312
        %v2314 = vrsqrt.pop %v2313
        %v2315 = vmul.f32 %v2313, %v2314
        %vm2316 = vcmp.eq.f32.partialorder %v2313, inf
        %v2317 = vsel %vm2316, %v2313, %v2315
        %vm2318 = vcmp.eq.f32.partialorder %v2313, 0.0
        %v2319 = vand.u32 %v2313, 2147483648
        %v2320 = vsel %vm2318, %v2319, %v2317
        %v2321 = vmul.f32 %v449, %v449
        %v2322 = vsel %vm456, %v2321, 0.0
        %v2323 = vrot.slane %v2322, 4
        %v2324 = vadd.f32 %v2322, %v2323
        %v2325 = vrot.slane %v2324, 2
        %v2326 = vadd.f32 %v2324, %v2325
        %v2327 = vrot.slane %v2326, 1
        %v2328 = vadd.f32 %v2326, %v2327
        %v2329 = vrsqrt.pop %v2328
        %v2330 = vmul.f32 %v2328, %v2329
        %vm2331 = vcmp.eq.f32.partialorder %v2328, inf
        %v2332 = vsel %vm2331, %v2328, %v2330
        %vm2333 = vcmp.eq.f32.partialorder %v2328, 0.0
        %v2334 = vand.u32 %v2328, 2147483648
        %v2335 = vsel %vm2333, %v2334, %v2332
        %v2336 = vmax.f32 %v2320, 1e-08
        %v2337 = vrcp.pop %v2336
        %v2338 = vmul.f32 %v2335, %v2337
        %v2339 = vmul.f32 %v2305, %v2338
        %2340 = vst.msk [vmem:[%s427] sm:$0xff] %vm456, %v2339
        %s2341 = sand.u32 %s289, 1
        %s2342 = scalar_lea.sflag [#allocation3], %s2341
        %s2343 = sand.u32 %s289, 1
        %s2344 = smul.addr %s2343, 8
        %s2345 = scalar_lea.vmem [#allocation2], %s2344
        // Predicated region
        $region65: #{_forward_jit.1} parent=63 // pred_check
          %p2346 = pneg %p299
        $region66: #{_forward_jit.1} parent=63 // pred_check_branch
          %2348 = sbr.rel (%p2346) target = $region68
        $region67: #{_forward_jit.1} parent=63 // pred_region
          %s2350 = ssub.s32 128, 128
          %2351 = vsyncadd %s2342, %s2350
          %s2352 = smul.addr %s25, 128
          %s2353 = scalar_lea.hbm %s11, %s2352
          %s2355 = sshll.u32 %s2345, 4
          %s2356 = int_to_ptr.vmem [resolvable:$true] %s2355
          %2358 = dma.vmem_to_hbm [thread:$0]  %s2356, 128, %s2353, %s2342
        $region68: #{_forward_jit.1} parent=63 // pred_fallthru
          _
      $region64: #{_forward_jit.1} parent=5 // pred_fallthru
        _
      %p2359 = scmp.le.s32.totalorder 2, %s20
      // Predicated region
      $region69: #{_forward_jit.1} parent=5 // pred_check
        %p2360 = pneg %p2359
      $region70: #{_forward_jit.1} parent=5 // pred_check_branch
        %2362 = sbr.rel (%p2360) target = $region72
      $region71: #{_forward_jit.1} parent=5 // pred_region
        %s2363 = ssub.s32 %s20, 2
        // Predicated region
        $region73: #{_forward_jit.1} parent=71 // pred_check
          %p2364 = pneg %p305
        $region74: #{_forward_jit.1} parent=71 // pred_check_branch
          %2366 = sbr.rel (%p2364) target = $region76
        $region75: #{_forward_jit.1} parent=71 // pred_region
          %s2367 = sand.u32 %s290, 1
          %s2368 = scalar_lea.sflag [#allocation3], %s2367
          %s2369 = sand.u32 %s290, 1
          %s2370 = smul.addr %s2369, 8
          %s2371 = scalar_lea.vmem [#allocation2], %s2370
          %2372 = dma.done %s2368, 128
        $region76: #{_forward_jit.1} parent=71 // pred_fallthru
          _
      $region72: #{_forward_jit.1} parent=5 // pred_fallthru
        _
    $region6: #{_forward_jit.1} parent=1 // loop_footer
      %s24 = sadd.s32 1, %s20
    $region7: #{_forward_jit.1} parent=1 // loop_footer_branch
      %19 = sbr.rel target = $region3
    $region8: #{_forward_jit.1} parent=1 // loop_exit
      _
    %2373 = vsyncpa [#allocation3], 1
    %s2374 = scalar_lea.sflag [#allocation3], 1
    %2375 = vsyncpa %s2374, 1

</llo_original>
